<compile_context>
chip_gen: v7x
topology: tpu7x:2x2x1
jax: 0.10.0
libtpu: 0.0.40
codegen_flags: <defaults>
</compile_context>

<pallas_src>
import jax
import jax.numpy as jnp
import numpy as np
from jax.experimental import pallas as pl
from jax.experimental.pallas import tpu as pltpu


def local_matching_kernel(cs_ref, rs_ref, w1_ref, b1_ref, w2_ref, b2_ref,
                          cl_ref, rl_ref):
    # cs_ref: (Bblk, Lc, D), rs_ref: (Bblk, Lr, D)
    # w1_ref/w2_ref: (3D, H) bf16 pre-folded+packed [Wa+Wc ; Wb-Wc ; Wd]
    # b1_ref/b2_ref: (1, H) f32
    Bblk, Lc, D = cs_ref.shape
    Lr = rs_ref.shape[1]
    H = b1_ref.shape[1]

    cs = cs_ref[...]                     # (Bblk, Lc, D) f32
    rs = rs_ref[...]                     # (Bblk, Lr, D) f32

    # ---- attention scores (f32 operands -> faithful softmax numerics) ----
    # Both orientations computed directly so each softmax reduces over the
    # minor (lane) axis and neither attention matmul needs a transposed operand.
    e_cr = jnp.einsum("bcd,brd->bcr", cs, rs,
                      preferred_element_type=jnp.float32)   # (Bblk, Lc, Lr)
    e_rc = jnp.einsum("brd,bcd->brc", rs, cs,
                      preferred_element_type=jnp.float32)   # (Bblk, Lr, Lc)

    p_cr = jnp.exp(e_cr - jnp.max(e_cr, axis=-1, keepdims=True))
    alpha = p_cr * pl.reciprocal(jnp.sum(p_cr, axis=-1, keepdims=True),
                                 approx=True)                # softmax over response axis
    p_rc = jnp.exp(e_rc - jnp.max(e_rc, axis=-1, keepdims=True))
    beta_t = p_rc * pl.reciprocal(jnp.sum(p_rc, axis=-1, keepdims=True),
                                  approx=True)               # beta^T: softmax over context axis

    # ---- attended vectors (bf16 MXU operands, f32 accumulation) ----
    cd = jnp.einsum("bcr,brd->bcd",
                    alpha.astype(jnp.bfloat16), rs.astype(jnp.bfloat16),
                    preferred_element_type=jnp.float32)      # (Bblk, Lc, D)
    rd = jnp.einsum("brc,bcd->brd",
                    beta_t.astype(jnp.bfloat16), cs.astype(jnp.bfloat16),
                    preferred_element_type=jnp.float32)      # (Bblk, Lr, D)

    # ---- FC path: fold batch into M, single K-packed matmul per output ----
    # Concats/reshapes done in f32 (8-sublane tiles; Lc, Lr are multiples of 8
    # so the (Bblk, L, 3D) -> (Bblk*L, 3D) merge is tile-aligned and free),
    # then a single bf16 cast feeds the MXU.
    xc = jnp.concatenate([cs, cd, cs * cd], axis=-1).reshape(Bblk * Lc, 3 * D)
    cl = jnp.dot(xc.astype(jnp.bfloat16), w1_ref[...],
                 preferred_element_type=jnp.float32) + b1_ref[...]
    cl_ref[...] = jnp.maximum(cl, 0.0).reshape(Bblk, Lc, H).astype(cl_ref.dtype)

    xr = jnp.concatenate([rs, rd, rs * rd], axis=-1).reshape(Bblk * Lr, 3 * D)
    rl = jnp.dot(xr.astype(jnp.bfloat16), w2_ref[...],
                 preferred_element_type=jnp.float32) + b2_ref[...]
    rl_ref[...] = jnp.maximum(rl, 0.0).reshape(Bblk, Lr, H).astype(rl_ref.dtype)


def local_matching(cs, rs, w1t, b1, w2t, b2, *, block_b=None):
    """cs: (B, Lc, D), rs: (B, Lr, D), w1t/w2t: (4D, H) = fc.weight.T, b1/b2: (1, H)."""
    B, Lc, D = cs.shape
    _, Lr, _ = rs.shape
    H = w1t.shape[1]
    assert w1t.shape[0] == 4 * D and w2t.shape == w1t.shape
    assert b1.shape == (1, H) and b2.shape == (1, H)

    if block_b is None:
        # Keep >= 2 grid blocks so both v7x TensorCores get work; within that,
        # make the per-step batch block as large as possible to amortize the
        # ~0.35us/grid-step pipeline overhead (v5e/v6e have 1 TC, so the
        # "parallel" annotation is a no-op there and bigger blocks only help).
        block_b = B // 2 if (B >= 2 and B % 2 == 0) else 1
    assert B % block_b == 0
    num_blocks = B // block_b

    def fold_pack(wt):
        # wt is ordered [Wa; Wb; Wc; Wd] for FC inputs [x, d, x-d, x*d].
        # Fold the (x-d)@Wc term and lane-pack K: [x|d|x*d] @ [Wa+Wc; Wb-Wc; Wd].
        wa, wb, wc, wd = wt[0:D], wt[D:2 * D], wt[2 * D:3 * D], wt[3 * D:4 * D]
        return jnp.concatenate([wa + wc, wb - wc, wd], axis=0).astype(jnp.bfloat16)

    w1p = fold_pack(w1t)   # (3D, H) bf16
    w2p = fold_pack(w2t)   # (3D, H) bf16

    grid_spec = pltpu.PrefetchScalarGridSpec(
        num_scalar_prefetch=0,
        grid=(num_blocks,),
        in_specs=[
            pl.BlockSpec((block_b, Lc, D), lambda i: (i, 0, 0)),
            pl.BlockSpec((block_b, Lr, D), lambda i: (i, 0, 0)),
            pl.BlockSpec((3 * D, H), lambda i: (0, 0)),
            pl.BlockSpec((1, H), lambda i: (0, 0)),
            pl.BlockSpec((3 * D, H), lambda i: (0, 0)),
            pl.BlockSpec((1, H), lambda i: (0, 0)),
        ],
        out_specs=[
            pl.BlockSpec((block_b, Lc, H), lambda i: (i, 0, 0)),
            pl.BlockSpec((block_b, Lr, H), lambda i: (i, 0, 0)),
        ],
    )
    return pl.pallas_call(
        local_matching_kernel,
        out_shape=(
            jax.ShapeDtypeStruct((B, Lc, H), cs.dtype),
            jax.ShapeDtypeStruct((B, Lr, H), rs.dtype),
        ),
        grid_spec=grid_spec,
        compiler_params=pltpu.CompilerParams(
            dimension_semantics=("parallel",)),
    )(cs, rs, w1p, b1, w2p, b2)


def local_matching_ref(cs, rs, w1t, b1, w2t, b2):
    # Pure-JAX f32 reference mirroring the PyTorch module (dropout = identity).
    e = jnp.einsum("bcd,brd->bcr", cs, rs)
    alpha = jax.nn.softmax(e, axis=2)
    beta = jax.nn.softmax(e, axis=1)
    cd = jnp.einsum("bcr,brd->bcd", alpha, rs)
    rd = jnp.einsum("bcr,bcd->brd", beta, cs)
    raw_cl = jnp.concatenate([cs, cd, cs - cd, cs * cd], axis=2)
    raw_rl = jnp.concatenate([rs, rd, rs - rd, rs * rd], axis=2)
    cl = jax.nn.relu(raw_cl @ w1t + b1[0])
    rl = jax.nn.relu(raw_rl @ w2t + b2[0])
    return cl, rl


if __name__ == "__main__":
    # Shapes consistent with the module: hidden_size=32 -> feature dim D = 2*H = 64,
    # fc input dim = 8*H = 256. B=4 so the kernel exercises batch-blocked grid
    # steps (grid=(2,), Bblk=2).
    B, Lc, Lr, hidden = 4, 16, 24, 32
    D = 2 * hidden        # 64
    F_in = 8 * hidden     # 256

    key = jax.random.PRNGKey(0)
    k_cs, k_rs, k_w1, k_b1, k_w2, k_b2 = jax.random.split(key, 6)

    cs = jax.random.normal(k_cs, (B, Lc, D), dtype=jnp.float32)
    rs = jax.random.normal(k_rs, (B, Lr, D), dtype=jnp.float32)

    # Deterministic parameter init mirroring the module's __init__:
    # fc weights: xavier_uniform_ on (hidden, 8*hidden); biases: default Linear init.
    xav = np.sqrt(6.0 / (F_in + hidden))
    w1 = jax.random.uniform(k_w1, (hidden, F_in), jnp.float32, -xav, xav)
    w2 = jax.random.uniform(k_w2, (hidden, F_in), jnp.float32, -xav, xav)
    bb = 1.0 / np.sqrt(F_in)
    b1 = jax.random.uniform(k_b1, (1, hidden), jnp.float32, -bb, bb)
    b2 = jax.random.uniform(k_b2, (1, hidden), jnp.float32, -bb, bb)
    w1t = w1.T  # (8H, H) -- module-style layout; folding/packing happens in the wrapper
    w2t = w2.T  # (8H, H)

    cl, rl = local_matching(cs, rs, w1t, b1, w2t, b2)
    cl = jax.block_until_ready(cl)
    rl = jax.block_until_ready(rl)

    cl_ref, rl_ref = local_matching_ref(cs, rs, w1t, b1, w2t, b2)
    # Tolerance loosened vs v1: MXU operands (alpha/beta, cd/rd, FC inputs and
    # weights) are bf16-rounded; accumulation stays f32.
    np.testing.assert_allclose(np.asarray(cl), np.asarray(cl_ref), rtol=5e-2, atol=5e-2)
    np.testing.assert_allclose(np.asarray(rl), np.asarray(rl_ref), rtol=5e-2, atol=5e-2)

    print("KERNEL_OK")
</pallas_src>

<mosaic_0001>
module attributes {stable_mosaic.version = 11 : i64} {
  func.func @local_matching_kernel(%arg0: i32, %arg1: memref<2x16x64xf32, #tpu.memory_space<vmem>>, %arg2: memref<2x24x64xf32, #tpu.memory_space<vmem>>, %arg3: memref<192x32xbf16, #tpu.memory_space<vmem>>, %arg4: memref<1x32xf32, #tpu.memory_space<vmem>>, %arg5: memref<192x32xbf16, #tpu.memory_space<vmem>>, %arg6: memref<1x32xf32, #tpu.memory_space<vmem>>, %arg7: memref<2x16x32xf32, #tpu.memory_space<vmem>>, %arg8: memref<2x24x32xf32, #tpu.memory_space<vmem>>) attributes {dimension_semantics = [#tpu.dimension_semantics<parallel>], iteration_bounds = array<i64: 2>, scalar_prefetch = 0 : i64, scratch_operands = 0 : i64, tpu.core_type = #tpu.core_type<tc>, window_params = [{transform_indices = @transform_0, window_bounds = array<i64: 2, 16, 64>}, {transform_indices = @transform_1, window_bounds = array<i64: 2, 24, 64>}, {pipeline_mode = #tpu.pipeline_mode<synchronous>, transform_indices = @transform_2, window_bounds = array<i64: 192, 32>}, {pipeline_mode = #tpu.pipeline_mode<synchronous>, transform_indices = @transform_3, window_bounds = array<i64: 1, 32>}, {pipeline_mode = #tpu.pipeline_mode<synchronous>, transform_indices = @transform_4, window_bounds = array<i64: 192, 32>}, {pipeline_mode = #tpu.pipeline_mode<synchronous>, transform_indices = @transform_5, window_bounds = array<i64: 1, 32>}, {transform_indices = @transform_6, window_bounds = array<i64: 2, 16, 32>}, {transform_indices = @transform_7, window_bounds = array<i64: 2, 24, 32>}]} {
    %c0 = arith.constant 0 : index
    %c0_0 = arith.constant 0 : index
    %c0_1 = arith.constant 0 : index
    %0 = vector.load %arg1[%c0, %c0_0, %c0_1] : memref<2x16x64xf32, #tpu.memory_space<vmem>>, vector<2x16x64xf32>
    %c0_2 = arith.constant 0 : index
    %c0_3 = arith.constant 0 : index
    %c0_4 = arith.constant 0 : index
    %1 = vector.load %arg2[%c0_2, %c0_3, %c0_4] : memref<2x24x64xf32, #tpu.memory_space<vmem>>, vector<2x24x64xf32>
    "tpu.trace_start"() <{level = 10 : i32, message = "bcd,brd->bcr"}> : () -> ()
    %cst = arith.constant dense<0.000000e+00> : vector<2x16x24xf32>
    %2 = tpu.matmul %0, %1, %cst {dimension_numbers = #tpu.dot_dimension_numbers<[2], [2], [1], [1], [0, 0, 0, 1, 1, 1], [0], [0]>} : vector<2x16x64xf32>, vector<2x24x64xf32>, vector<2x16x24xf32> -> vector<2x16x24xf32>
    "tpu.trace_stop"() : () -> ()
    "tpu.trace_start"() <{level = 10 : i32, message = "brd,bcd->brc"}> : () -> ()
    %cst_5 = arith.constant dense<0.000000e+00> : vector<2x24x16xf32>
    %3 = tpu.matmul %1, %0, %cst_5 {dimension_numbers = #tpu.dot_dimension_numbers<[2], [2], [1], [1], [0, 0, 0, 1, 1, 1], [0], [0]>} : vector<2x24x64xf32>, vector<2x16x64xf32>, vector<2x24x16xf32> -> vector<2x24x16xf32>
    "tpu.trace_stop"() : () -> ()
    %cst_6 = arith.constant dense<0xFF800000> : vector<2x16xf32>
    %4 = vector.multi_reduction <maximumf>, %2, %cst_6 [2] : vector<2x16x24xf32> to vector<2x16xf32>
    %5 = vector.shape_cast %4 : vector<2x16xf32> to vector<2x16x1xf32>
    %6 = vector.broadcast %5 : vector<2x16x1xf32> to vector<2x16x24xf32>
    %7 = arith.subf %2, %6 : vector<2x16x24xf32>
    %8 = math.exp %7 : vector<2x16x24xf32>
    %cst_7 = arith.constant dense<0.000000e+00> : vector<2x16xf32>
    %9 = vector.multi_reduction <add>, %8, %cst_7 [2] : vector<2x16x24xf32> to vector<2x16xf32>
    %10 = vector.shape_cast %9 : vector<2x16xf32> to vector<2x16x1xf32>
    %11 = tpu.reciprocal %10 {approx = true} : vector<2x16x1xf32> -> vector<2x16x1xf32>
    %12 = vector.broadcast %11 : vector<2x16x1xf32> to vector<2x16x24xf32>
    %13 = arith.mulf %8, %12 : vector<2x16x24xf32>
    %cst_8 = arith.constant dense<0xFF800000> : vector<2x24xf32>
    %14 = vector.multi_reduction <maximumf>, %3, %cst_8 [2] : vector<2x24x16xf32> to vector<2x24xf32>
    %15 = vector.shape_cast %14 : vector<2x24xf32> to vector<2x24x1xf32>
    %16 = vector.broadcast %15 : vector<2x24x1xf32> to vector<2x24x16xf32>
    %17 = arith.subf %3, %16 : vector<2x24x16xf32>
    %18 = math.exp %17 : vector<2x24x16xf32>
    %cst_9 = arith.constant dense<0.000000e+00> : vector<2x24xf32>
    %19 = vector.multi_reduction <add>, %18, %cst_9 [2] : vector<2x24x16xf32> to vector<2x24xf32>
    %20 = vector.shape_cast %19 : vector<2x24xf32> to vector<2x24x1xf32>
    %21 = tpu.reciprocal %20 {approx = true} : vector<2x24x1xf32> -> vector<2x24x1xf32>
    %22 = vector.broadcast %21 : vector<2x24x1xf32> to vector<2x24x16xf32>
    %23 = arith.mulf %18, %22 : vector<2x24x16xf32>
    %24 = arith.truncf %13 : vector<2x16x24xf32> to vector<2x16x24xbf16>
    %25 = arith.truncf %1 : vector<2x24x64xf32> to vector<2x24x64xbf16>
    "tpu.trace_start"() <{level = 10 : i32, message = "bcr,brd->bcd"}> : () -> ()
    %cst_10 = arith.constant dense<0.000000e+00> : vector<2x16x64xf32>
    %26 = tpu.matmul %24, %25, %cst_10 {dimension_numbers = #tpu.dot_dimension_numbers<[2], [1], [1], [2], [0, 0, 0, 1, 1, 2], [0], [0]>} : vector<2x16x24xbf16>, vector<2x24x64xbf16>, vector<2x16x64xf32> -> vector<2x16x64xf32>
    "tpu.trace_stop"() : () -> ()
    %27 = arith.truncf %23 : vector<2x24x16xf32> to vector<2x24x16xbf16>
    %28 = arith.truncf %0 : vector<2x16x64xf32> to vector<2x16x64xbf16>
    "tpu.trace_start"() <{level = 10 : i32, message = "brc,bcd->brd"}> : () -> ()
    %cst_11 = arith.constant dense<0.000000e+00> : vector<2x24x64xf32>
    %29 = tpu.matmul %27, %28, %cst_11 {dimension_numbers = #tpu.dot_dimension_numbers<[2], [1], [1], [2], [0, 0, 0, 1, 1, 2], [0], [0]>} : vector<2x24x16xbf16>, vector<2x16x64xbf16>, vector<2x24x64xf32> -> vector<2x24x64xf32>
    "tpu.trace_stop"() : () -> ()
    %30 = arith.mulf %0, %26 : vector<2x16x64xf32>
    %31 = tpu.concatenate %0, %26, %30 in 2 : vector<2x16x64xf32>, vector<2x16x64xf32>, vector<2x16x64xf32> -> vector<2x16x192xf32>
    %32 = vector.shape_cast %31 : vector<2x16x192xf32> to vector<32x192xf32>
    %33 = arith.truncf %32 : vector<32x192xf32> to vector<32x192xbf16>
    %c0_12 = arith.constant 0 : index
    %c0_13 = arith.constant 0 : index
    %34 = vector.load %arg3[%c0_12, %c0_13] : memref<192x32xbf16, #tpu.memory_space<vmem>>, vector<192x32xbf16>
    %cst_14 = arith.constant dense<0.000000e+00> : vector<32x32xf32>
    %35 = tpu.matmul %33, %34, %cst_14 {dimension_numbers = #tpu.dot_dimension_numbers<[1], [0], [0], [1], [0, 0, 1, 1], [], []>} : vector<32x192xbf16>, vector<192x32xbf16>, vector<32x32xf32> -> vector<32x32xf32>
    %c0_15 = arith.constant 0 : index
    %c0_16 = arith.constant 0 : index
    %36 = vector.load %arg4[%c0_15, %c0_16] : memref<1x32xf32, #tpu.memory_space<vmem>>, vector<1x32xf32>
    %37 = vector.broadcast %36 : vector<1x32xf32> to vector<32x32xf32>
    %38 = arith.addf %35, %37 : vector<32x32xf32>
    %cst_17 = arith.constant 0.000000e+00 : f32
    %39 = vector.broadcast %cst_17 : f32 to vector<32x32xf32>
    %40 = arith.maximumf %38, %39 : vector<32x32xf32>
    %41 = vector.shape_cast %40 : vector<32x32xf32> to vector<2x16x32xf32>
    %c0_18 = arith.constant 0 : index
    %c0_19 = arith.constant 0 : index
    %c0_20 = arith.constant 0 : index
    %42 = vector.load %arg7[%c0_18, %c0_19, %c0_20] : memref<2x16x32xf32, #tpu.memory_space<vmem>>, vector<2x16x32xf32>
    tpu.vector_store %arg7[%c0_18, %c0_19, %c0_20], %41 {strides = array<i32>} : memref<2x16x32xf32, #tpu.memory_space<vmem>>, vector<2x16x32xf32>,
    %43 = arith.mulf %1, %29 : vector<2x24x64xf32>
    %44 = tpu.concatenate %1, %29, %43 in 2 : vector<2x24x64xf32>, vector<2x24x64xf32>, vector<2x24x64xf32> -> vector<2x24x192xf32>
    %45 = vector.shape_cast %44 : vector<2x24x192xf32> to vector<48x192xf32>
    %46 = arith.truncf %45 : vector<48x192xf32> to vector<48x192xbf16>
    %c0_21 = arith.constant 0 : index
    %c0_22 = arith.constant 0 : index
    %47 = vector.load %arg5[%c0_21, %c0_22] : memref<192x32xbf16, #tpu.memory_space<vmem>>, vector<192x32xbf16>
    %cst_23 = arith.constant dense<0.000000e+00> : vector<48x32xf32>
    %48 = tpu.matmul %46, %47, %cst_23 {dimension_numbers = #tpu.dot_dimension_numbers<[1], [0], [0], [1], [0, 0, 1, 1], [], []>} : vector<48x192xbf16>, vector<192x32xbf16>, vector<48x32xf32> -> vector<48x32xf32>
    %c0_24 = arith.constant 0 : index
    %c0_25 = arith.constant 0 : index
    %49 = vector.load %arg6[%c0_24, %c0_25] : memref<1x32xf32, #tpu.memory_space<vmem>>, vector<1x32xf32>
    %50 = vector.broadcast %49 : vector<1x32xf32> to vector<48x32xf32>
    %51 = arith.addf %48, %50 : vector<48x32xf32>
    %cst_26 = arith.constant 0.000000e+00 : f32
    %52 = vector.broadcast %cst_26 : f32 to vector<48x32xf32>
    %53 = arith.maximumf %51, %52 : vector<48x32xf32>
    %54 = vector.shape_cast %53 : vector<48x32xf32> to vector<2x24x32xf32>
    %c0_27 = arith.constant 0 : index
    %c0_28 = arith.constant 0 : index
    %c0_29 = arith.constant 0 : index
    %55 = vector.load %arg8[%c0_27, %c0_28, %c0_29] : memref<2x24x32xf32, #tpu.memory_space<vmem>>, vector<2x24x32xf32>
    tpu.vector_store %arg8[%c0_27, %c0_28, %c0_29], %54 {strides = array<i32>} : memref<2x24x32xf32, #tpu.memory_space<vmem>>, vector<2x24x32xf32>,
    return
  }
  func.func @transform_0(%arg0: i32) -> (i32, i32, i32) {
    %c0_i32 = arith.constant 0 : i32
    %c0_i32_0 = arith.constant 0 : i32
    %c0_i32_1 = arith.constant 0 : i32
    return %arg0, %c0_i32, %c0_i32_0 : i32, i32, i32
  }
  func.func @transform_1(%arg0: i32) -> (i32, i32, i32) {
    %c0_i32 = arith.constant 0 : i32
    %c0_i32_0 = arith.constant 0 : i32
    %c0_i32_1 = arith.constant 0 : i32
    return %arg0, %c0_i32, %c0_i32_0 : i32, i32, i32
  }
  func.func @transform_2(%arg0: i32) -> (i32, i32) {
    %c0_i32 = arith.constant 0 : i32
    %c0_i32_0 = arith.constant 0 : i32
    %c0_i32_1 = arith.constant 0 : i32
    return %c0_i32, %c0_i32_0 : i32, i32
  }
  func.func @transform_3(%arg0: i32) -> (i32, i32) {
    %c0_i32 = arith.constant 0 : i32
    %c0_i32_0 = arith.constant 0 : i32
    %c0_i32_1 = arith.constant 0 : i32
    return %c0_i32, %c0_i32_0 : i32, i32
  }
  func.func @transform_4(%arg0: i32) -> (i32, i32) {
    %c0_i32 = arith.constant 0 : i32
    %c0_i32_0 = arith.constant 0 : i32
    %c0_i32_1 = arith.constant 0 : i32
    return %c0_i32, %c0_i32_0 : i32, i32
  }
  func.func @transform_5(%arg0: i32) -> (i32, i32) {
    %c0_i32 = arith.constant 0 : i32
    %c0_i32_0 = arith.constant 0 : i32
    %c0_i32_1 = arith.constant 0 : i32
    return %c0_i32, %c0_i32_0 : i32, i32
  }
  func.func @transform_6(%arg0: i32) -> (i32, i32, i32) {
    %c0_i32 = arith.constant 0 : i32
    %c0_i32_0 = arith.constant 0 : i32
    %c0_i32_1 = arith.constant 0 : i32
    return %arg0, %c0_i32, %c0_i32_0 : i32, i32, i32
  }
  func.func @transform_7(%arg0: i32) -> (i32, i32, i32) {
    %c0_i32 = arith.constant 0 : i32
    %c0_i32_0 = arith.constant 0 : i32
    %c0_i32_1 = arith.constant 0 : i32
    return %arg0, %c0_i32, %c0_i32_0 : i32, i32, i32
  }
}

</mosaic_0001>

<llo_original>
// kernel: tpu_custom_call.1
$region0: #{tpu_custom_call.1}
  #allocation0 [shape = 'u32[]', space=smem, size = 0x4, offset = 0x4, fixed_abs, tag = 'smem constant byte address 0x4 - core index']
  #allocation1 [shape = 'u32[144,128]{1,0:T(1,128)}', space=vmem, size = 0x12000, scoped, tag = 'internal scratch']
  %s0 = inlined_call_operand.vmem [shape: f32[4,16,64], index: 0, kind: input, shape index: {}]
  %s1 = inlined_call_operand.vmem [shape: f32[4,24,64], index: 1, kind: input, shape index: {}]
  %s2 = inlined_call_operand.vmem [shape: bf16[192,32], index: 2, kind: input, shape index: {}]
  %s3 = inlined_call_operand.vmem [shape: f32[1,32], index: 3, kind: input, shape index: {}]
  %s4 = inlined_call_operand.vmem [shape: bf16[192,32], index: 4, kind: input, shape index: {}]
  %s5 = inlined_call_operand.vmem [shape: f32[1,32], index: 5, kind: input, shape index: {}]
  %s6 = inlined_call_operand.hbm [shape: f32[4,16,32], index: 6, kind: output, shape index: {0}]
  %s7 = inlined_call_operand.hbm [shape: f32[4,24,32], index: 7, kind: output, shape index: {1}]
  %8 = xla_tuple %s6, %s7
  %s9 = sld [smem:[#allocation0]]
  $region65: #{tpu_custom_call.1} parent=0
    _
  %s11 = ssub.s32 1, %s9
  %s12 = scalar_select 0, %s11, %s9
  $region1: #{tpu_custom_call.1} parent=0
    #allocation2 [shape = 'u8[32768]{0}', space=vmem, size = 0x8000, scoped, tag = 'output window, operand 0']
    #allocation3 [shape = 's32[2]{0}', space=sflag, size = 0x8, scoped, tag = 'scoped memory for tpu_custom_call.1']
    #allocation4 [shape = 'u8[49152]{0}', space=vmem, size = 0xc000, scoped, tag = 'output window, operand 1']
    #allocation5 [shape = 's32[2]{0}', space=sflag, size = 0x8, scoped, tag = 'scoped memory for tpu_custom_call.1']
    %13 = vsyncpa [#allocation3], 0
    %s14 = scalar_lea.sflag [#allocation3], 1
    %15 = vsyncpa %s14, 0
    %16 = vsyncpa [#allocation5], 0
    %s17 = scalar_lea.sflag [#allocation5], 1
    %18 = vsyncpa %s17, 0
    loop: start=0, step=1, limit=4
    $region2: #{tpu_custom_call.1} parent=1 // loop_pre_header
      _
    $region3: #{tpu_custom_call.1} parent=1 // loop_header
      %s20 = sphi 0, %s24
      %p21 = scmp.ge.s32.totalorder %s20, 4
      %s30 = sphi 0, %s32
      %s33 = sphi 0, %s30
      %s34 = sphi 0, %s33
      %s50 = sphi 0, %s34
      %s56 = sphi 0, %s58
      %s59 = sphi 0, %s56
      %s60 = sphi 0, %s59
      %s76 = sphi 0, %s60
      %s80 = sphi 0, %s80
      %s82 = sphi 0, %s80
      %s83 = sphi 0, %s82
      %s97 = sphi 0, %s83
      %s101 = sphi 0, %s101
      %s103 = sphi 0, %s101
      %s104 = sphi 0, %s103
      %s118 = sphi 0, %s104
      %s122 = sphi 0, %s122
      %s124 = sphi 0, %s122
      %s125 = sphi 0, %s124
      %s139 = sphi 0, %s125
      %s143 = sphi 0, %s143
      %s145 = sphi 0, %s143
      %s146 = sphi 0, %s145
      %s160 = sphi 0, %s146
      %s166 = sphi 0, %s168
      %s169 = sphi 0, %s166
      %s170 = sphi 0, %s169
      %s186 = sphi 0, %s170
      %s192 = sphi 0, %s194
      %s195 = sphi 0, %s192
      %s196 = sphi 0, %s195
      %s212 = sphi 0, %s196
    $region4: #{tpu_custom_call.1} parent=1 // loop_header_branch
      %23 = sbr.rel (%p21) target = $region8
    $region5: #{tpu_custom_call.1} parent=1 // loop_body
      %s25 = ssub.s32 %s20, 1
      %s26 = ssub.s32 %s20, 2
      %s27 = sadd.s32 %s20, 1
      %s28 = ssub.s32 %s20, %s27
      %p29 = scmp.eq.s32.totalorder %s28, 0
      %s31 = sadd.s32 %s30, 1
      %s32 = scalar_select %p29, %s30, %s31
      %p35 = pneg %p29
      %p36 = scmp.eq.s32.totalorder %s20, 1
      %p37 = por %p35, %p36
      %p38 = scmp.ne.s32.totalorder %s30, %s33
      %p39 = scmp.eq.s32.totalorder %s20, 0
      %p40 = por %p38, %p39
      %p41 = scmp.ne.s32.totalorder %s30, %s33
      %p42 = scmp.eq.s32.totalorder %s25, 1
      %p43 = por %p41, %p42
      %p44 = scmp.ne.s32.totalorder %s33, %s34
      %p45 = scmp.eq.s32.totalorder %s25, 0
      %p46 = por %p44, %p45
      %p47 = scmp.ne.s32.totalorder %s33, %s34
      %p48 = scmp.eq.s32.totalorder %s26, 1
      %p49 = por %p47, %p48
      %p51 = scmp.ne.s32.totalorder %s34, %s50
      %p52 = scmp.eq.s32.totalorder %s26, 0
      %p53 = por %p51, %p52
      %s54 = ssub.s32 %s20, %s27
      %p55 = scmp.eq.s32.totalorder %s54, 0
      %s57 = sadd.s32 %s56, 1
      %s58 = scalar_select %p55, %s56, %s57
      %p61 = pneg %p55
      %p62 = scmp.eq.s32.totalorder %s20, 1
      %p63 = por %p61, %p62
      %p64 = scmp.ne.s32.totalorder %s56, %s59
      %p65 = scmp.eq.s32.totalorder %s20, 0
      %p66 = por %p64, %p65
      %p67 = scmp.ne.s32.totalorder %s56, %s59
      %p68 = scmp.eq.s32.totalorder %s25, 1
      %p69 = por %p67, %p68
      %p70 = scmp.ne.s32.totalorder %s59, %s60
      %p71 = scmp.eq.s32.totalorder %s25, 0
      %p72 = por %p70, %p71
      %p73 = scmp.ne.s32.totalorder %s59, %s60
      %p74 = scmp.eq.s32.totalorder %s26, 1
      %p75 = por %p73, %p74
      %p77 = scmp.ne.s32.totalorder %s60, %s76
      %p78 = scmp.eq.s32.totalorder %s26, 0
      %p79 = por %p77, %p78
      %s81 = sadd.s32 %s80, 1
      %p84 = scmp.eq.s32.totalorder %s20, 1
      %p85 = scmp.ne.s32.totalorder %s80, %s82
      %p86 = scmp.eq.s32.totalorder %s20, 0
      %p87 = por %p85, %p86
      %p88 = scmp.ne.s32.totalorder %s80, %s82
      %p89 = scmp.eq.s32.totalorder %s25, 1
      %p90 = por %p88, %p89
      %p91 = scmp.ne.s32.totalorder %s82, %s83
      %p92 = scmp.eq.s32.totalorder %s25, 0
      %p93 = por %p91, %p92
      %p94 = scmp.ne.s32.totalorder %s82, %s83
      %p95 = scmp.eq.s32.totalorder %s26, 1
      %p96 = por %p94, %p95
      %p98 = scmp.ne.s32.totalorder %s83, %s97
      %p99 = scmp.eq.s32.totalorder %s26, 0
      %p100 = por %p98, %p99
      %s102 = sadd.s32 %s101, 1
      %p105 = scmp.eq.s32.totalorder %s20, 1
      %p106 = scmp.ne.s32.totalorder %s101, %s103
      %p107 = scmp.eq.s32.totalorder %s20, 0
      %p108 = por %p106, %p107
      %p109 = scmp.ne.s32.totalorder %s101, %s103
      %p110 = scmp.eq.s32.totalorder %s25, 1
      %p111 = por %p109, %p110
      %p112 = scmp.ne.s32.totalorder %s103, %s104
      %p113 = scmp.eq.s32.totalorder %s25, 0
      %p114 = por %p112, %p113
      %p115 = scmp.ne.s32.totalorder %s103, %s104
      %p116 = scmp.eq.s32.totalorder %s26, 1
      %p117 = por %p115, %p116
      %p119 = scmp.ne.s32.totalorder %s104, %s118
      %p120 = scmp.eq.s32.totalorder %s26, 0
      %p121 = por %p119, %p120
      %s123 = sadd.s32 %s122, 1
      %p126 = scmp.eq.s32.totalorder %s20, 1
      %p127 = scmp.ne.s32.totalorder %s122, %s124
      %p128 = scmp.eq.s32.totalorder %s20, 0
      %p129 = por %p127, %p128
      %p130 = scmp.ne.s32.totalorder %s122, %s124
      %p131 = scmp.eq.s32.totalorder %s25, 1
      %p132 = por %p130, %p131
      %p133 = scmp.ne.s32.totalorder %s124, %s125
      %p134 = scmp.eq.s32.totalorder %s25, 0
      %p135 = por %p133, %p134
      %p136 = scmp.ne.s32.totalorder %s124, %s125
      %p137 = scmp.eq.s32.totalorder %s26, 1
      %p138 = por %p136, %p137
      %p140 = scmp.ne.s32.totalorder %s125, %s139
      %p141 = scmp.eq.s32.totalorder %s26, 0
      %p142 = por %p140, %p141
      %s144 = sadd.s32 %s143, 1
      %p147 = scmp.eq.s32.totalorder %s20, 1
      %p148 = scmp.ne.s32.totalorder %s143, %s145
      %p149 = scmp.eq.s32.totalorder %s20, 0
      %p150 = por %p148, %p149
      %p151 = scmp.ne.s32.totalorder %s143, %s145
      %p152 = scmp.eq.s32.totalorder %s25, 1
      %p153 = por %p151, %p152
      %p154 = scmp.ne.s32.totalorder %s145, %s146
      %p155 = scmp.eq.s32.totalorder %s25, 0
      %p156 = por %p154, %p155
      %p157 = scmp.ne.s32.totalorder %s145, %s146
      %p158 = scmp.eq.s32.totalorder %s26, 1
      %p159 = por %p157, %p158
      %p161 = scmp.ne.s32.totalorder %s146, %s160
      %p162 = scmp.eq.s32.totalorder %s26, 0
      %p163 = por %p161, %p162
      %s164 = ssub.s32 %s20, %s27
      %p165 = scmp.eq.s32.totalorder %s164, 0
      %s167 = sadd.s32 %s166, 1
      %s168 = scalar_select %p165, %s166, %s167
      %p171 = pneg %p165
      %p172 = scmp.eq.s32.totalorder %s20, 1
      %p173 = por %p171, %p172
      %p174 = scmp.ne.s32.totalorder %s166, %s169
      %p175 = scmp.eq.s32.totalorder %s20, 0
      %p176 = por %p174, %p175
      %p177 = scmp.ne.s32.totalorder %s166, %s169
      %p178 = scmp.eq.s32.totalorder %s25, 1
      %p179 = por %p177, %p178
      %p180 = scmp.ne.s32.totalorder %s169, %s170
      %p181 = scmp.eq.s32.totalorder %s25, 0
      %p182 = por %p180, %p181
      %p183 = scmp.ne.s32.totalorder %s169, %s170
      %p184 = scmp.eq.s32.totalorder %s26, 1
      %p185 = por %p183, %p184
      %p187 = scmp.ne.s32.totalorder %s170, %s186
      %p188 = scmp.eq.s32.totalorder %s26, 0
      %p189 = por %p187, %p188
      %s190 = ssub.s32 %s20, %s27
      %p191 = scmp.eq.s32.totalorder %s190, 0
      %s193 = sadd.s32 %s192, 1
      %s194 = scalar_select %p191, %s192, %s193
      %p197 = pneg %p191
      %p198 = scmp.eq.s32.totalorder %s20, 1
      %p199 = por %p197, %p198
      %p200 = scmp.ne.s32.totalorder %s192, %s195
      %p201 = scmp.eq.s32.totalorder %s20, 0
      %p202 = por %p200, %p201
      %p203 = scmp.ne.s32.totalorder %s192, %s195
      %p204 = scmp.eq.s32.totalorder %s25, 1
      %p205 = por %p203, %p204
      %p206 = scmp.ne.s32.totalorder %s195, %s196
      %p207 = scmp.eq.s32.totalorder %s25, 0
      %p208 = por %p206, %p207
      %p209 = scmp.ne.s32.totalorder %s195, %s196
      %p210 = scmp.eq.s32.totalorder %s26, 1
      %p211 = por %p209, %p210
      %p213 = scmp.ne.s32.totalorder %s196, %s212
      %p214 = scmp.eq.s32.totalorder %s26, 0
      %p215 = por %p213, %p214
      %p216 = scmp.le.s32.totalorder 1, %s20
      %p217 = scmp.lt.s32.totalorder %s20, 3
      %p218 = pnand %p216, %p217
      %p219 = pneg %p218
      // Predicated region
      $region9: #{tpu_custom_call.1} parent=5 // pred_check
        _
      $region10: #{tpu_custom_call.1} parent=5 // pred_check_branch
        %221 = sbr.rel (%p218) target = $region12
      $region11: #{tpu_custom_call.1} parent=5 // pred_region
        %s222 = ssub.s32 %s20, 1
        // Predicated region
        $region13: #{tpu_custom_call.1} parent=11 // pred_check
          %p223 = pneg %p93
        $region14: #{tpu_custom_call.1} parent=11 // pred_check_branch
          %225 = sbr.rel (%p223) target = $region16
        $region15: #{tpu_custom_call.1} parent=11 // pred_region
          _
        $region16: #{tpu_custom_call.1} parent=11 // pred_fallthru
          _
        // Predicated region
        $region17: #{tpu_custom_call.1} parent=11 // pred_check
          %p226 = pneg %p114
        $region18: #{tpu_custom_call.1} parent=11 // pred_check_branch
          %228 = sbr.rel (%p226) target = $region20
        $region19: #{tpu_custom_call.1} parent=11 // pred_region
          _
        $region20: #{tpu_custom_call.1} parent=11 // pred_fallthru
          _
        // Predicated region
        $region21: #{tpu_custom_call.1} parent=11 // pred_check
          %p229 = pneg %p135
        $region22: #{tpu_custom_call.1} parent=11 // pred_check_branch
          %231 = sbr.rel (%p229) target = $region24
        $region23: #{tpu_custom_call.1} parent=11 // pred_region
          _
        $region24: #{tpu_custom_call.1} parent=11 // pred_fallthru
          _
        // Predicated region
        $region25: #{tpu_custom_call.1} parent=11 // pred_check
          %p232 = pneg %p156
        $region26: #{tpu_custom_call.1} parent=11 // pred_check_branch
          %234 = sbr.rel (%p232) target = $region28
        $region27: #{tpu_custom_call.1} parent=11 // pred_region
          _
        $region28: #{tpu_custom_call.1} parent=11 // pred_fallthru
          _
      $region12: #{tpu_custom_call.1} parent=5 // pred_fallthru
        _
      %p235 = scmp.lt.s32.totalorder %s20, 2
      // Predicated region
      $region29: #{tpu_custom_call.1} parent=5 // pred_check
        %p236 = pneg %p235
      $region30: #{tpu_custom_call.1} parent=5 // pred_check_branch
        %238 = sbr.rel (%p236) target = $region32
      $region31: #{tpu_custom_call.1} parent=5 // pred_region
        // Predicated region
        $region33: #{tpu_custom_call.1} parent=31 // pred_check
          %p239 = pneg %p40
        $region34: #{tpu_custom_call.1} parent=31 // pred_check_branch
          %241 = sbr.rel (%p239) target = $region36
        $region35: #{tpu_custom_call.1} parent=31 // pred_region
          %s242 = smul.u32 2, %s20
          %p243 = scmp.lt.s32.totalorder %s242, 3
          %s244 = scalar_select %p243, %s242, 3
          %s245 = smul.addr %s244, 2
          %s246 = smul.addr %s245, 8
          %s247 = scalar_lea.vmem %s0, %s246
          %s248 = smul.u32 2, %s20
        $region36: #{tpu_custom_call.1} parent=31 // pred_fallthru
          _
        // Predicated region
        $region37: #{tpu_custom_call.1} parent=31 // pred_check
          %p249 = pneg %p66
        $region38: #{tpu_custom_call.1} parent=31 // pred_check_branch
          %251 = sbr.rel (%p249) target = $region40
        $region39: #{tpu_custom_call.1} parent=31 // pred_region
          %s252 = smul.u32 2, %s20
          %p253 = scmp.lt.s32.totalorder %s252, 3
          %s254 = scalar_select %p253, %s252, 3
          %s255 = smul.addr %s254, 3
          %s256 = smul.addr %s255, 8
          %s257 = scalar_lea.vmem %s1, %s256
          %s258 = smul.u32 2, %s20
        $region40: #{tpu_custom_call.1} parent=31 // pred_fallthru
          _
      $region32: #{tpu_custom_call.1} parent=5 // pred_fallthru
        _
      %p259 = scmp.le.s32.totalorder 1, %s20
      %p260 = scmp.lt.s32.totalorder %s20, 3
      %p261 = pnand %p259, %p260
      %p262 = pneg %p261
      // Predicated region
      $region41: #{tpu_custom_call.1} parent=5 // pred_check
        _
      $region42: #{tpu_custom_call.1} parent=5 // pred_check_branch
        %264 = sbr.rel (%p261) target = $region44
      $region43: #{tpu_custom_call.1} parent=5 // pred_region
        %s265 = ssub.s32 %s20, 1
        %s266 = smul.u32 2, %s25
        %p267 = scmp.lt.s32.totalorder %s266, 3
        %s268 = scalar_select %p267, %s266, 3
        %s269 = smul.addr %s268, 2
        %s270 = smul.addr %s269, 8
        %s271 = scalar_lea.vmem %s0, %s270
        %p272 = pneg %p46
        %p273 = pneg %p43
        %s274 = smul.u32 2, %s25
        %p275 = scmp.lt.s32.totalorder %s274, 3
        %s276 = scalar_select %p275, %s274, 3
        %s277 = smul.addr %s276, 3
        %s278 = smul.addr %s277, 8
        %s279 = scalar_lea.vmem %s1, %s278
        %p280 = pneg %p72
        %p281 = pneg %p69
        %p282 = pneg %p93
        %p283 = pneg %p90
        %p284 = pneg %p114
        %p285 = pneg %p111
        %p286 = pneg %p135
        %p287 = pneg %p132
        %p288 = pneg %p156
        %p289 = pneg %p153
        %p290 = pneg %p182
        %p291 = pneg %p179
        %s292 = sand.u32 %s169, 1
        %s293 = scalar_lea.sflag [#allocation3], %s292
        %s294 = sand.u32 %s169, 1
        %s295 = smul.addr %s294, 32
        %s296 = scalar_lea.vmem [#allocation2], %s295
        %p297 = pneg %p208
        %p298 = pneg %p205
        %s299 = sand.u32 %s195, 1
        %s300 = scalar_lea.sflag [#allocation5], %s299
        %s301 = sand.u32 %s195, 1
        %s302 = smul.addr %s301, 48
        %s303 = scalar_lea.vmem [#allocation4], %s302
        %s304 = smul.u32 2, %s25
        %p305 = scmp.lt.s32.totalorder %s304, 3
        %s306 = scalar_select %p305, %s304, 3
        %s307 = smul.addr %s306, 2
        %s308 = smul.addr %s307, 8
        %s309 = scalar_lea.vmem %s0, %s308
        %s310 = smul.u32 2, %s25
        %s311 = smul.u32 2, %s25
        %p312 = scmp.lt.s32.totalorder %s311, 3
        %s313 = scalar_select %p312, %s311, 3
        %s314 = smul.addr %s313, 3
        %s315 = smul.addr %s314, 8
        %s316 = scalar_lea.vmem %s1, %s315
        %s317 = smul.u32 2, %s25
        %s318 = smul.u32 2, %s25
        %s319 = smul.u32 2, %s25
        %v321 = vld [vmem:[%s309] sm:$0xff]
        %v322 = vld [vmem:[%s309 + $0x8] sm:$0xff]
        %v323 = vld [vmem:[%s309 + $0x10] sm:$0xff]
        %v324 = vld [vmem:[%s309 + $0x18] sm:$0xff]
        %v325 = vld [vmem:[%s316] sm:$0xff]
        %v326 = vld [vmem:[%s316 + $0x8] sm:$0xff]
        %v327 = vld [vmem:[%s316 + $0x10] sm:$0xff]
        %v328 = vld [vmem:[%s316 + $0x18] sm:$0xff]
        %v329 = vld [vmem:[%s316 + $0x20] sm:$0xff]
        %v330 = vld [vmem:[%s316 + $0x28] sm:$0xff]
        %vm331 = vcmask 523264
        %v333 = vsel %vm331, %v321, 0
        %v336 = vsel %vm331, %v322, 0
        %v339 = vsel %vm331, %v325, 0
        %v342 = vsel %vm331, %v326, 0
        %v345 = vsel %vm331, %v327, 0
        %347 = vmatprep.subr.mxu0 0.0
        %348 = vmatpush1.xpose.msra.mxu0 %v339
        %349 = vmatprep.subr.mxu0 0.0
        %350 = vmatpush1.xpose.msra.mxu0 %v342
        %351 = vmatprep.subr.mxu0 0.0
        %352 = vmatpush1.xpose.msra.mxu0 %v345
        %353 = vmatprep.subr.mxu0 0.0
        %354 = vmatpush1.xpose.msra.mxu0 0.0
        %355 = vmatprep.subr.mxu0 0.0
        %356 = vmatpush1.xpose.msra.mxu0 0.0
        %357 = vmatprep.subr.mxu0 0.0
        %358 = vmatpush1.xpose.msra.mxu0 0.0
        %359 = vmatprep.subr.mxu0 0.0
        %360 = vmatpush1.xpose.msra.mxu0 0.0
        %361 = vmatprep.subr.mxu0 0.0
        %362 = vmatpush1.xpose.msra.mxu0 0.0
        %363 = vmatprep.subr.mxu0 0.0
        %364 = vmatpush1.xpose.msra.mxu0 0.0
        %365 = vmatprep.subr.mxu0 0.0
        %366 = vmatpush1.xpose.msra.mxu0 0.0
        %367 = vmatprep.subr.mxu0 0.0
        %368 = vmatpush1.xpose.msra.mxu0 0.0
        %369 = vmatprep.subr.mxu0 0.0
        %370 = vmatpush1.xpose.msra.mxu0 0.0
        %371 = vmatprep.subr.mxu0 0.0
        %372 = vmatpush1.xpose.msra.mxu0 0.0
        %373 = vmatprep.subr.mxu0 0.0
        %374 = vmatpush1.xpose.msra.mxu0 0.0
        %375 = vmatprep.subr.mxu0 0.0
        %376 = vmatpush1.xpose.msra.mxu0 0.0
        %377 = vmatprep.subr.mxu0 0.0
        %378 = vmatpush1.xpose.msra.mxu0 0.0
        %379 = vmatprep.subr.mxu0 0.0
        %380 = vmatpush1.xpose.msra.mxu0 0.0
        %381 = vmatprep.subr.mxu0 0.0
        %382 = vmatpush1.xpose.msra.mxu0 0.0
        %383 = vmatprep.subr.mxu0 0.0
        %384 = vmatpush1.xpose.msra.mxu0 0.0
        %385 = vmatprep.subr.mxu0 0.0
        %386 = vmatpush1.xpose.msra.mxu0 0.0
        %387 = vmatprep.subr.mxu0 0.0
        %388 = vmatpush1.xpose.msra.mxu0 0.0
        %389 = vmatprep.subr.mxu0 0.0
        %390 = vmatpush1.xpose.msra.mxu0 0.0
        %391 = vmatprep.subr.mxu0 0.0
        %392 = vmatpush1.xpose.msra.mxu0 0.0
        %393 = vmatprep.subr.mxu0 0.0
        %394 = vmatpush1.xpose.msra.mxu0 0.0
        %395 = vmatprep.subr.mxu0 0.0
        %396 = vmatpush1.xpose.msra.mxu0 0.0
        %397 = vmatprep.subr.mxu0 0.0
        %398 = vmatpush1.xpose.msra.mxu0 0.0
        %399 = vmatprep.subr.mxu0 0.0
        %400 = vmatpush1.xpose.msra.mxu0 0.0
        %401 = vmatprep.subr.mxu0 0.0
        %402 = vmatpush1.xpose.msra.mxu0 0.0
        %403 = vmatprep.subr.mxu0 0.0
        %404 = vmatpush1.xpose.msra.mxu0 0.0
        %405 = vmatprep.subr.mxu0 0.0
        %406 = vmatpush1.xpose.msra.mxu0 0.0
        %407 = vmatprep.subr.mxu0 0.0
        %408 = vmatpush1.xpose.msra.mxu0 0.0
        %409 = vmatprep.subr.mxu0 0.0
        %410 = vmatpush1.xpose.msra.mxu0 0.0
        %411 = vmatprep.mubr.f32.mxu0 0.0
        %412 = vmatmul.mubr.f32.gmra.mrb[0].mxu0 %v333
        %v413 = vpop.f32.mrb[0].mxu0
        %v414 = vadd.f32 0.0, %v413
        %v415 = vpop.f32.mrb[0].mxu0
        %416 = vmatprep.mubr.f32.mxu0 0.0
        %417 = vmatmul.mubr.f32.gmra.mrb[0].mxu0 %v336
        %v418 = vpop.f32.mrb[0].mxu0
        %v419 = vadd.f32 0.0, %v418
        %v420 = vpop.f32.mrb[0].mxu0
        %421 = vdwg.mxu0
        %v423 = vsel %vm331, %v323, 0
        %v426 = vsel %vm331, %v324, 0
        %v429 = vsel %vm331, %v328, 0
        %v432 = vsel %vm331, %v329, 0
        %v435 = vsel %vm331, %v330, 0
        %437 = vmatprep.subr.mxu0 0.0
        %438 = vmatpush1.xpose.msra.mxu0 %v429
        %439 = vmatprep.subr.mxu0 0.0
        %440 = vmatpush1.xpose.msra.mxu0 %v432
        %441 = vmatprep.subr.mxu0 0.0
        %442 = vmatpush1.xpose.msra.mxu0 %v435
        %443 = vmatprep.subr.mxu0 0.0
        %444 = vmatpush1.xpose.msra.mxu0 0.0
        %445 = vmatprep.subr.mxu0 0.0
        %446 = vmatpush1.xpose.msra.mxu0 0.0
        %447 = vmatprep.subr.mxu0 0.0
        %448 = vmatpush1.xpose.msra.mxu0 0.0
        %449 = vmatprep.subr.mxu0 0.0
        %450 = vmatpush1.xpose.msra.mxu0 0.0
        %451 = vmatprep.subr.mxu0 0.0
        %452 = vmatpush1.xpose.msra.mxu0 0.0
        %453 = vmatprep.subr.mxu0 0.0
        %454 = vmatpush1.xpose.msra.mxu0 0.0
        %455 = vmatprep.subr.mxu0 0.0
        %456 = vmatpush1.xpose.msra.mxu0 0.0
        %457 = vmatprep.subr.mxu0 0.0
        %458 = vmatpush1.xpose.msra.mxu0 0.0
        %459 = vmatprep.subr.mxu0 0.0
        %460 = vmatpush1.xpose.msra.mxu0 0.0
        %461 = vmatprep.subr.mxu0 0.0
        %462 = vmatpush1.xpose.msra.mxu0 0.0
        %463 = vmatprep.subr.mxu0 0.0
        %464 = vmatpush1.xpose.msra.mxu0 0.0
        %465 = vmatprep.subr.mxu0 0.0
        %466 = vmatpush1.xpose.msra.mxu0 0.0
        %467 = vmatprep.subr.mxu0 0.0
        %468 = vmatpush1.xpose.msra.mxu0 0.0
        %469 = vmatprep.subr.mxu0 0.0
        %470 = vmatpush1.xpose.msra.mxu0 0.0
        %471 = vmatprep.subr.mxu0 0.0
        %472 = vmatpush1.xpose.msra.mxu0 0.0
        %473 = vmatprep.subr.mxu0 0.0
        %474 = vmatpush1.xpose.msra.mxu0 0.0
        %475 = vmatprep.subr.mxu0 0.0
        %476 = vmatpush1.xpose.msra.mxu0 0.0
        %477 = vmatprep.subr.mxu0 0.0
        %478 = vmatpush1.xpose.msra.mxu0 0.0
        %479 = vmatprep.subr.mxu0 0.0
        %480 = vmatpush1.xpose.msra.mxu0 0.0
        %481 = vmatprep.subr.mxu0 0.0
        %482 = vmatpush1.xpose.msra.mxu0 0.0
        %483 = vmatprep.subr.mxu0 0.0
        %484 = vmatpush1.xpose.msra.mxu0 0.0
        %485 = vmatprep.subr.mxu0 0.0
        %486 = vmatpush1.xpose.msra.mxu0 0.0
        %487 = vmatprep.subr.mxu0 0.0
        %488 = vmatpush1.xpose.msra.mxu0 0.0
        %489 = vmatprep.subr.mxu0 0.0
        %490 = vmatpush1.xpose.msra.mxu0 0.0
        %491 = vmatprep.subr.mxu0 0.0
        %492 = vmatpush1.xpose.msra.mxu0 0.0
        %493 = vmatprep.subr.mxu0 0.0
        %494 = vmatpush1.xpose.msra.mxu0 0.0
        %495 = vmatprep.subr.mxu0 0.0
        %496 = vmatpush1.xpose.msra.mxu0 0.0
        %497 = vmatprep.subr.mxu0 0.0
        %498 = vmatpush1.xpose.msra.mxu0 0.0
        %499 = vmatprep.subr.mxu0 0.0
        %500 = vmatpush1.xpose.msra.mxu0 0.0
        %501 = vmatprep.mubr.f32.mxu0 0.0
        %502 = vmatmul.mubr.f32.gmra.mrb[0].mxu0 %v423
        %v503 = vpop.f32.mrb[0].mxu0
        %v504 = vadd.f32 0.0, %v503
        %v505 = vpop.f32.mrb[0].mxu0
        %506 = vmatprep.mubr.f32.mxu0 0.0
        %507 = vmatmul.mubr.f32.gmra.mrb[0].mxu0 %v426
        %v508 = vpop.f32.mrb[0].mxu0
        %v509 = vadd.f32 0.0, %v508
        %v510 = vpop.f32.mrb[0].mxu0
        %511 = vdwg.mxu0
        %512 = vmatprep.subr.mxu0 0.0
        %513 = vmatpush1.xpose.msra.mxu0 %v333
        %514 = vmatprep.subr.mxu0 0.0
        %515 = vmatpush1.xpose.msra.mxu0 %v336
        %516 = vmatprep.subr.mxu0 0.0
        %517 = vmatpush1.xpose.msra.mxu0 0.0
        %518 = vmatprep.subr.mxu0 0.0
        %519 = vmatpush1.xpose.msra.mxu0 0.0
        %520 = vmatprep.subr.mxu0 0.0
        %521 = vmatpush1.xpose.msra.mxu0 0.0
        %522 = vmatprep.subr.mxu0 0.0
        %523 = vmatpush1.xpose.msra.mxu0 0.0
        %524 = vmatprep.subr.mxu0 0.0
        %525 = vmatpush1.xpose.msra.mxu0 0.0
        %526 = vmatprep.subr.mxu0 0.0
        %527 = vmatpush1.xpose.msra.mxu0 0.0
        %528 = vmatprep.subr.mxu0 0.0
        %529 = vmatpush1.xpose.msra.mxu0 0.0
        %530 = vmatprep.subr.mxu0 0.0
        %531 = vmatpush1.xpose.msra.mxu0 0.0
        %532 = vmatprep.subr.mxu0 0.0
        %533 = vmatpush1.xpose.msra.mxu0 0.0
        %534 = vmatprep.subr.mxu0 0.0
        %535 = vmatpush1.xpose.msra.mxu0 0.0
        %536 = vmatprep.subr.mxu0 0.0
        %537 = vmatpush1.xpose.msra.mxu0 0.0
        %538 = vmatprep.subr.mxu0 0.0
        %539 = vmatpush1.xpose.msra.mxu0 0.0
        %540 = vmatprep.subr.mxu0 0.0
        %541 = vmatpush1.xpose.msra.mxu0 0.0
        %542 = vmatprep.subr.mxu0 0.0
        %543 = vmatpush1.xpose.msra.mxu0 0.0
        %544 = vmatprep.subr.mxu0 0.0
        %545 = vmatpush1.xpose.msra.mxu0 0.0
        %546 = vmatprep.subr.mxu0 0.0
        %547 = vmatpush1.xpose.msra.mxu0 0.0
        %548 = vmatprep.subr.mxu0 0.0
        %549 = vmatpush1.xpose.msra.mxu0 0.0
        %550 = vmatprep.subr.mxu0 0.0
        %551 = vmatpush1.xpose.msra.mxu0 0.0
        %552 = vmatprep.subr.mxu0 0.0
        %553 = vmatpush1.xpose.msra.mxu0 0.0
        %554 = vmatprep.subr.mxu0 0.0
        %555 = vmatpush1.xpose.msra.mxu0 0.0
        %556 = vmatprep.subr.mxu0 0.0
        %557 = vmatpush1.xpose.msra.mxu0 0.0
        %558 = vmatprep.subr.mxu0 0.0
        %559 = vmatpush1.xpose.msra.mxu0 0.0
        %560 = vmatprep.subr.mxu0 0.0
        %561 = vmatpush1.xpose.msra.mxu0 0.0
        %562 = vmatprep.subr.mxu0 0.0
        %563 = vmatpush1.xpose.msra.mxu0 0.0
        %564 = vmatprep.subr.mxu0 0.0
        %565 = vmatpush1.xpose.msra.mxu0 0.0
        %566 = vmatprep.subr.mxu0 0.0
        %567 = vmatpush1.xpose.msra.mxu0 0.0
        %568 = vmatprep.subr.mxu0 0.0
        %569 = vmatpush1.xpose.msra.mxu0 0.0
        %570 = vmatprep.subr.mxu0 0.0
        %571 = vmatpush1.xpose.msra.mxu0 0.0
        %572 = vmatprep.subr.mxu0 0.0
        %573 = vmatpush1.xpose.msra.mxu0 0.0
        %574 = vmatprep.subr.mxu0 0.0
        %575 = vmatpush1.xpose.msra.mxu0 0.0
        %576 = vmatprep.mubr.f32.mxu0 0.0
        %577 = vmatmul.mubr.f32.gmra.mrb[0].mxu0 %v339
        %v578 = vpop.f32.mrb[0].mxu0
        %v579 = vadd.f32 0.0, %v578
        %v580 = vpop.f32.mrb[0].mxu0
        %581 = vmatprep.mubr.f32.mxu0 0.0
        %582 = vmatmul.mubr.f32.gmra.mrb[0].mxu0 %v342
        %v583 = vpop.f32.mrb[0].mxu0
        %v584 = vadd.f32 0.0, %v583
        %v585 = vpop.f32.mrb[0].mxu0
        %586 = vmatprep.mubr.f32.mxu0 0.0
        %587 = vmatmul.mubr.f32.gmra.mrb[0].mxu0 %v345
        %v588 = vpop.f32.mrb[0].mxu0
        %v589 = vadd.f32 0.0, %v588
        %v590 = vpop.f32.mrb[0].mxu0
        %591 = vdwg.mxu0
        %592 = vmatprep.subr.mxu0 0.0
        %593 = vmatpush1.xpose.msra.mxu0 %v423
        %594 = vmatprep.subr.mxu0 0.0
        %595 = vmatpush1.xpose.msra.mxu0 %v426
        %596 = vmatprep.subr.mxu0 0.0
        %597 = vmatpush1.xpose.msra.mxu0 0.0
        %598 = vmatprep.subr.mxu0 0.0
        %599 = vmatpush1.xpose.msra.mxu0 0.0
        %600 = vmatprep.subr.mxu0 0.0
        %601 = vmatpush1.xpose.msra.mxu0 0.0
        %602 = vmatprep.subr.mxu0 0.0
        %603 = vmatpush1.xpose.msra.mxu0 0.0
        %604 = vmatprep.subr.mxu0 0.0
        %605 = vmatpush1.xpose.msra.mxu0 0.0
        %606 = vmatprep.subr.mxu0 0.0
        %607 = vmatpush1.xpose.msra.mxu0 0.0
        %608 = vmatprep.subr.mxu0 0.0
        %609 = vmatpush1.xpose.msra.mxu0 0.0
        %610 = vmatprep.subr.mxu0 0.0
        %611 = vmatpush1.xpose.msra.mxu0 0.0
        %612 = vmatprep.subr.mxu0 0.0
        %613 = vmatpush1.xpose.msra.mxu0 0.0
        %614 = vmatprep.subr.mxu0 0.0
        %615 = vmatpush1.xpose.msra.mxu0 0.0
        %616 = vmatprep.subr.mxu0 0.0
        %617 = vmatpush1.xpose.msra.mxu0 0.0
        %618 = vmatprep.subr.mxu0 0.0
        %619 = vmatpush1.xpose.msra.mxu0 0.0
        %620 = vmatprep.subr.mxu0 0.0
        %621 = vmatpush1.xpose.msra.mxu0 0.0
        %622 = vmatprep.subr.mxu0 0.0
        %623 = vmatpush1.xpose.msra.mxu0 0.0
        %624 = vmatprep.subr.mxu0 0.0
        %625 = vmatpush1.xpose.msra.mxu0 0.0
        %626 = vmatprep.subr.mxu0 0.0
        %627 = vmatpush1.xpose.msra.mxu0 0.0
        %628 = vmatprep.subr.mxu0 0.0
        %629 = vmatpush1.xpose.msra.mxu0 0.0
        %630 = vmatprep.subr.mxu0 0.0
        %631 = vmatpush1.xpose.msra.mxu0 0.0
        %632 = vmatprep.subr.mxu0 0.0
        %633 = vmatpush1.xpose.msra.mxu0 0.0
        %634 = vmatprep.subr.mxu0 0.0
        %635 = vmatpush1.xpose.msra.mxu0 0.0
        %636 = vmatprep.subr.mxu0 0.0
        %637 = vmatpush1.xpose.msra.mxu0 0.0
        %638 = vmatprep.subr.mxu0 0.0
        %639 = vmatpush1.xpose.msra.mxu0 0.0
        %640 = vmatprep.subr.mxu0 0.0
        %641 = vmatpush1.xpose.msra.mxu0 0.0
        %642 = vmatprep.subr.mxu0 0.0
        %643 = vmatpush1.xpose.msra.mxu0 0.0
        %644 = vmatprep.subr.mxu0 0.0
        %645 = vmatpush1.xpose.msra.mxu0 0.0
        %646 = vmatprep.subr.mxu0 0.0
        %647 = vmatpush1.xpose.msra.mxu0 0.0
        %648 = vmatprep.subr.mxu0 0.0
        %649 = vmatpush1.xpose.msra.mxu0 0.0
        %650 = vmatprep.subr.mxu0 0.0
        %651 = vmatpush1.xpose.msra.mxu0 0.0
        %652 = vmatprep.subr.mxu0 0.0
        %653 = vmatpush1.xpose.msra.mxu0 0.0
        %654 = vmatprep.subr.mxu0 0.0
        %655 = vmatpush1.xpose.msra.mxu0 0.0
        %656 = vmatprep.mubr.f32.mxu0 0.0
        %657 = vmatmul.mubr.f32.gmra.mrb[0].mxu0 %v429
        %v658 = vpop.f32.mrb[0].mxu0
        %v659 = vadd.f32 0.0, %v658
        %v660 = vpop.f32.mrb[0].mxu0
        %661 = vmatprep.mubr.f32.mxu0 0.0
        %662 = vmatmul.mubr.f32.gmra.mrb[0].mxu0 %v432
        %v663 = vpop.f32.mrb[0].mxu0
        %v664 = vadd.f32 0.0, %v663
        %v665 = vpop.f32.mrb[0].mxu0
        %666 = vmatprep.mubr.f32.mxu0 0.0
        %667 = vmatmul.mubr.f32.gmra.mrb[0].mxu0 %v435
        %v668 = vpop.f32.mrb[0].mxu0
        %v669 = vadd.f32 0.0, %v668
        %v670 = vpop.f32.mrb[0].mxu0
        %671 = vdwg.mxu0
        %vm672 = vcmask 195584
        %v673 = vsel %vm672, %v414, -inf
        %674 = vmax.xlane.f32.xlu0 %v673
        %v675 = vpop.xlane.xlu0 %674
        %v676 = vsel %vm672, %v419, -inf
        %677 = vmax.xlane.f32.xlu0 %v676
        %v678 = vpop.xlane.xlu0 %677
        %v679 = vsel %vm672, %v504, -inf
        %680 = vmax.xlane.f32.xlu0 %v679
        %v681 = vpop.xlane.xlu0 %680
        %v682 = vsel %vm672, %v509, -inf
        %683 = vmax.xlane.f32.xlu0 %v682
        %v684 = vpop.xlane.xlu0 %683
        %v685 = vsub.f32 %v414, %v675
        %v686 = vsub.f32 %v419, %v678
        %v687 = vsub.f32 %v504, %v681
        %v688 = vsub.f32 %v509, %v684
        %v689 = vmul.f32 %v685, 1.442695
        %v690 = vpow.pop %v689
        %v691 = vmul.f32 %v686, 1.442695
        %v692 = vpow.pop %v691
        %v693 = vmul.f32 %v687, 1.442695
        %v694 = vpow.pop %v693
        %v695 = vmul.f32 %v688, 1.442695
        %v696 = vpow.pop %v695
        %v697 = vsel %vm672, %v690, 0.0
        %698 = vadd.xlane.f32.xlu0 %v697
        %v699 = vpop.xlane.xlu0 %698
        %v700 = vsel %vm672, %v692, 0.0
        %701 = vadd.xlane.f32.xlu0 %v700
        %v702 = vpop.xlane.xlu0 %701
        %v703 = vsel %vm672, %v694, 0.0
        %704 = vadd.xlane.f32.xlu0 %v703
        %v705 = vpop.xlane.xlu0 %704
        %v706 = vsel %vm672, %v696, 0.0
        %707 = vadd.xlane.f32.xlu0 %v706
        %v708 = vpop.xlane.xlu0 %707
        %v709 = vrcp.pop %v699
        %v710 = vrcp.pop %v702
        %v711 = vrcp.pop %v705
        %v712 = vrcp.pop %v708
        %v713 = vmul.f32 %v690, %v709
        %v714 = vmul.f32 %v692, %v710
        %v715 = vmul.f32 %v694, %v711
        %v716 = vmul.f32 %v696, %v712
        %vm717 = vcmask 130048
        %v718 = vsel %vm717, %v579, -inf
        %719 = vmax.xlane.f32.xlu0 %v718
        %v720 = vpop.xlane.xlu0 %719
        %v721 = vsel %vm717, %v584, -inf
        %722 = vmax.xlane.f32.xlu0 %v721
        %v723 = vpop.xlane.xlu0 %722
        %v724 = vsel %vm717, %v589, -inf
        %725 = vmax.xlane.f32.xlu0 %v724
        %v726 = vpop.xlane.xlu0 %725
        %v727 = vsel %vm717, %v659, -inf
        %728 = vmax.xlane.f32.xlu0 %v727
        %v729 = vpop.xlane.xlu0 %728
        %v730 = vsel %vm717, %v664, -inf
        %731 = vmax.xlane.f32.xlu0 %v730
        %v732 = vpop.xlane.xlu0 %731
        %v733 = vsel %vm717, %v669, -inf
        %734 = vmax.xlane.f32.xlu0 %v733
        %v735 = vpop.xlane.xlu0 %734
        %v736 = vsub.f32 %v579, %v720
        %v737 = vsub.f32 %v584, %v723
        %v738 = vsub.f32 %v589, %v726
        %v739 = vsub.f32 %v659, %v729
        %v740 = vsub.f32 %v664, %v732
        %v741 = vsub.f32 %v669, %v735
        %v742 = vmul.f32 %v736, 1.442695
        %v743 = vpow.pop %v742
        %v744 = vmul.f32 %v737, 1.442695
        %v745 = vpow.pop %v744
        %v746 = vmul.f32 %v738, 1.442695
        %v747 = vpow.pop %v746
        %v748 = vmul.f32 %v739, 1.442695
        %v749 = vpow.pop %v748
        %v750 = vmul.f32 %v740, 1.442695
        %v751 = vpow.pop %v750
        %v752 = vmul.f32 %v741, 1.442695
        %v753 = vpow.pop %v752
        %v754 = vsel %vm717, %v743, 0.0
        %755 = vadd.xlane.f32.xlu0 %v754
        %v756 = vpop.xlane.xlu0 %755
        %v757 = vsel %vm717, %v745, 0.0
        %758 = vadd.xlane.f32.xlu0 %v757
        %v759 = vpop.xlane.xlu0 %758
        %v760 = vsel %vm717, %v747, 0.0
        %761 = vadd.xlane.f32.xlu0 %v760
        %v762 = vpop.xlane.xlu0 %761
        %v763 = vsel %vm717, %v749, 0.0
        %764 = vadd.xlane.f32.xlu0 %v763
        %v765 = vpop.xlane.xlu0 %764
        %v766 = vsel %vm717, %v751, 0.0
        %767 = vadd.xlane.f32.xlu0 %v766
        %v768 = vpop.xlane.xlu0 %767
        %v769 = vsel %vm717, %v753, 0.0
        %770 = vadd.xlane.f32.xlu0 %v769
        %v771 = vpop.xlane.xlu0 %770
        %v772 = vrcp.pop %v756
        %v773 = vrcp.pop %v759
        %v774 = vrcp.pop %v762
        %v775 = vrcp.pop %v765
        %v776 = vrcp.pop %v768
        %v777 = vrcp.pop %v771
        %v778 = vmul.f32 %v743, %v772
        %v779 = vmul.f32 %v745, %v773
        %v780 = vmul.f32 %v747, %v774
        %v781 = vmul.f32 %v749, %v775
        %v782 = vmul.f32 %v751, %v776
        %v783 = vmul.f32 %v753, %v777
        %v784 = vpack.c.bf16 %v714, %v713
        %v785 = vpack.c.bf16 %v716, %v715
        %v786 = vpack.c.bf16 %v326, %v325
        %v787 = vpack.c.bf16 %v327, %v327
        %v788 = vpack.c.bf16 %v329, %v328
        %v789 = vpack.c.bf16 %v330, %v330
        %v791 = vsel %vm672, %v784, 0
        %vm793 = vcmask 1043456
        %v795 = vsel %vm793, %v787, 0
        %797 = vmatprep.subr.bf16.mxu0 0
        %798 = vmatpush1.bf16.msra.mxu0 %v786
        %799 = vmatprep.subr.bf16.mxu0 0
        %800 = vmatpush1.bf16.msra.mxu0 %v795
        %801 = vmatprep.subr.bf16.mxu0 0
        %802 = vmatpush1.bf16.msra.mxu0 0
        %803 = vmatprep.subr.bf16.mxu0 0
        %804 = vmatpush1.bf16.msra.mxu0 0
        %805 = vmatprep.subr.bf16.mxu0 0
        %806 = vmatpush1.bf16.msra.mxu0 0
        %807 = vmatprep.subr.bf16.mxu0 0
        %808 = vmatpush1.bf16.msra.mxu0 0
        %809 = vmatprep.subr.bf16.mxu0 0
        %810 = vmatpush1.bf16.msra.mxu0 0
        %811 = vmatprep.subr.bf16.mxu0 0
        %812 = vmatpush1.bf16.msra.mxu0 0
        %813 = vmatprep.subr.bf16.mxu0 0
        %814 = vmatpush1.bf16.msra.mxu0 0
        %815 = vmatprep.subr.bf16.mxu0 0
        %816 = vmatpush1.bf16.msra.mxu0 0
        %817 = vmatprep.subr.bf16.mxu0 0
        %818 = vmatpush1.bf16.msra.mxu0 0
        %819 = vmatprep.subr.bf16.mxu0 0
        %820 = vmatpush1.bf16.msra.mxu0 0
        %821 = vmatprep.subr.bf16.mxu0 0
        %822 = vmatpush1.bf16.msra.mxu0 0
        %823 = vmatprep.subr.bf16.mxu0 0
        %824 = vmatpush1.bf16.msra.mxu0 0
        %825 = vmatprep.subr.bf16.mxu0 0
        %826 = vmatpush1.bf16.msra.mxu0 0
        %827 = vmatprep.subr.bf16.mxu0 0
        %828 = vmatpush1.bf16.msra.mxu0 0
        %829 = vmatprep.mubr.bf16.mxu0 0
        %830 = vmatmul.mubr.bf16.gmra.mrb[0].mxu0 %v791
        %v831 = vpop.f32.mrb[0].mxu0
        %v832 = vadd.f32 0.0, %v831
        %v833 = vpop.f32.mrb[0].mxu0
        %v834 = vpop.f32.mrb[0].mxu0
        %v835 = vadd.f32 0.0, %v834
        %v836 = vpop.f32.mrb[0].mxu0
        %837 = vdwg.mxu0
        %v839 = vsel %vm672, %v785, 0
        %v842 = vsel %vm793, %v789, 0
        %844 = vmatprep.subr.bf16.mxu0 0
        %845 = vmatpush1.bf16.msra.mxu0 %v788
        %846 = vmatprep.subr.bf16.mxu0 0
        %847 = vmatpush1.bf16.msra.mxu0 %v842
        %848 = vmatprep.subr.bf16.mxu0 0
        %849 = vmatpush1.bf16.msra.mxu0 0
        %850 = vmatprep.subr.bf16.mxu0 0
        %851 = vmatpush1.bf16.msra.mxu0 0
        %852 = vmatprep.subr.bf16.mxu0 0
        %853 = vmatpush1.bf16.msra.mxu0 0
        %854 = vmatprep.subr.bf16.mxu0 0
        %855 = vmatpush1.bf16.msra.mxu0 0
        %856 = vmatprep.subr.bf16.mxu0 0
        %857 = vmatpush1.bf16.msra.mxu0 0
        %858 = vmatprep.subr.bf16.mxu0 0
        %859 = vmatpush1.bf16.msra.mxu0 0
        %860 = vmatprep.subr.bf16.mxu0 0
        %861 = vmatpush1.bf16.msra.mxu0 0
        %862 = vmatprep.subr.bf16.mxu0 0
        %863 = vmatpush1.bf16.msra.mxu0 0
        %864 = vmatprep.subr.bf16.mxu0 0
        %865 = vmatpush1.bf16.msra.mxu0 0
        %866 = vmatprep.subr.bf16.mxu0 0
        %867 = vmatpush1.bf16.msra.mxu0 0
        %868 = vmatprep.subr.bf16.mxu0 0
        %869 = vmatpush1.bf16.msra.mxu0 0
        %870 = vmatprep.subr.bf16.mxu0 0
        %871 = vmatpush1.bf16.msra.mxu0 0
        %872 = vmatprep.subr.bf16.mxu0 0
        %873 = vmatpush1.bf16.msra.mxu0 0
        %874 = vmatprep.subr.bf16.mxu0 0
        %875 = vmatpush1.bf16.msra.mxu0 0
        %876 = vmatprep.mubr.bf16.mxu0 0
        %877 = vmatmul.mubr.bf16.gmra.mrb[0].mxu0 %v839
        %v878 = vpop.f32.mrb[0].mxu0
        %v879 = vadd.f32 0.0, %v878
        %v880 = vpop.f32.mrb[0].mxu0
        %v881 = vpop.f32.mrb[0].mxu0
        %v882 = vadd.f32 0.0, %v881
        %v883 = vpop.f32.mrb[0].mxu0
        %884 = vdwg.mxu0
        %v885 = vpack.c.bf16 %v779, %v778
        %v886 = vpack.c.bf16 %v780, %v780
        %v887 = vpack.c.bf16 %v782, %v781
        %v888 = vpack.c.bf16 %v783, %v783
        %v889 = vpack.c.bf16 %v322, %v321
        %v890 = vpack.c.bf16 %v324, %v323
        %v892 = vsel %vm717, %v885, 0
        %v895 = vsel %vm717, %v886, 0
        %897 = vmatprep.subr.bf16.mxu0 0
        %898 = vmatpush1.bf16.msra.mxu0 %v889
        %899 = vmatprep.subr.bf16.mxu0 0
        %900 = vmatpush1.bf16.msra.mxu0 0
        %901 = vmatprep.subr.bf16.mxu0 0
        %902 = vmatpush1.bf16.msra.mxu0 0
        %903 = vmatprep.subr.bf16.mxu0 0
        %904 = vmatpush1.bf16.msra.mxu0 0
        %905 = vmatprep.subr.bf16.mxu0 0
        %906 = vmatpush1.bf16.msra.mxu0 0
        %907 = vmatprep.subr.bf16.mxu0 0
        %908 = vmatpush1.bf16.msra.mxu0 0
        %909 = vmatprep.subr.bf16.mxu0 0
        %910 = vmatpush1.bf16.msra.mxu0 0
        %911 = vmatprep.subr.bf16.mxu0 0
        %912 = vmatpush1.bf16.msra.mxu0 0
        %913 = vmatprep.subr.bf16.mxu0 0
        %914 = vmatpush1.bf16.msra.mxu0 0
        %915 = vmatprep.subr.bf16.mxu0 0
        %916 = vmatpush1.bf16.msra.mxu0 0
        %917 = vmatprep.subr.bf16.mxu0 0
        %918 = vmatpush1.bf16.msra.mxu0 0
        %919 = vmatprep.subr.bf16.mxu0 0
        %920 = vmatpush1.bf16.msra.mxu0 0
        %921 = vmatprep.subr.bf16.mxu0 0
        %922 = vmatpush1.bf16.msra.mxu0 0
        %923 = vmatprep.subr.bf16.mxu0 0
        %924 = vmatpush1.bf16.msra.mxu0 0
        %925 = vmatprep.subr.bf16.mxu0 0
        %926 = vmatpush1.bf16.msra.mxu0 0
        %927 = vmatprep.subr.bf16.mxu0 0
        %928 = vmatpush1.bf16.msra.mxu0 0
        %929 = vmatprep.mubr.bf16.mxu0 0
        %930 = vmatmul.mubr.bf16.gmra.mrb[0].mxu0 %v892
        %v931 = vpop.f32.mrb[0].mxu0
        %v932 = vadd.f32 0.0, %v931
        %v933 = vpop.f32.mrb[0].mxu0
        %v934 = vpop.f32.mrb[0].mxu0
        %v935 = vadd.f32 0.0, %v934
        %v936 = vpop.f32.mrb[0].mxu0
        %937 = vmatprep.mubr.bf16.mxu0 0
        %938 = vmatmul.mubr.bf16.gmra.mrb[0].mxu0 %v895
        %v939 = vpop.f32.mrb[0].mxu0
        %v940 = vadd.f32 0.0, %v939
        %v941 = vpop.f32.mrb[0].mxu0
        %v942 = vpop.f32.mrb[0].mxu0
        %v943 = vpop.f32.mrb[0].mxu0
        %944 = vdwg.mxu0
        %v946 = vsel %vm717, %v887, 0
        %v949 = vsel %vm717, %v888, 0
        %951 = vmatprep.subr.bf16.mxu0 0
        %952 = vmatpush1.bf16.msra.mxu0 %v890
        %953 = vmatprep.subr.bf16.mxu0 0
        %954 = vmatpush1.bf16.msra.mxu0 0
        %955 = vmatprep.subr.bf16.mxu0 0
        %956 = vmatpush1.bf16.msra.mxu0 0
        %957 = vmatprep.subr.bf16.mxu0 0
        %958 = vmatpush1.bf16.msra.mxu0 0
        %959 = vmatprep.subr.bf16.mxu0 0
        %960 = vmatpush1.bf16.msra.mxu0 0
        %961 = vmatprep.subr.bf16.mxu0 0
        %962 = vmatpush1.bf16.msra.mxu0 0
        %963 = vmatprep.subr.bf16.mxu0 0
        %964 = vmatpush1.bf16.msra.mxu0 0
        %965 = vmatprep.subr.bf16.mxu0 0
        %966 = vmatpush1.bf16.msra.mxu0 0
        %967 = vmatprep.subr.bf16.mxu0 0
        %968 = vmatpush1.bf16.msra.mxu0 0
        %969 = vmatprep.subr.bf16.mxu0 0
        %970 = vmatpush1.bf16.msra.mxu0 0
        %971 = vmatprep.subr.bf16.mxu0 0
        %972 = vmatpush1.bf16.msra.mxu0 0
        %973 = vmatprep.subr.bf16.mxu0 0
        %974 = vmatpush1.bf16.msra.mxu0 0
        %975 = vmatprep.subr.bf16.mxu0 0
        %976 = vmatpush1.bf16.msra.mxu0 0
        %977 = vmatprep.subr.bf16.mxu0 0
        %978 = vmatpush1.bf16.msra.mxu0 0
        %979 = vmatprep.subr.bf16.mxu0 0
        %980 = vmatpush1.bf16.msra.mxu0 0
        %981 = vmatprep.subr.bf16.mxu0 0
        %982 = vmatpush1.bf16.msra.mxu0 0
        %983 = vmatprep.mubr.bf16.mxu0 0
        %984 = vmatmul.mubr.bf16.gmra.mrb[0].mxu0 %v946
        %v985 = vpop.f32.mrb[0].mxu0
        %v986 = vadd.f32 0.0, %v985
        %v987 = vpop.f32.mrb[0].mxu0
        %v988 = vpop.f32.mrb[0].mxu0
        %v989 = vadd.f32 0.0, %v988
        %v990 = vpop.f32.mrb[0].mxu0
        %991 = vmatprep.mubr.bf16.mxu0 0
        %992 = vmatmul.mubr.bf16.gmra.mrb[0].mxu0 %v949
        %v993 = vpop.f32.mrb[0].mxu0
        %v994 = vadd.f32 0.0, %v993
        %v995 = vpop.f32.mrb[0].mxu0
        %v996 = vpop.f32.mrb[0].mxu0
        %v997 = vpop.f32.mrb[0].mxu0
        %998 = vdwg.mxu0
        %v999 = vmul.f32 %v321, %v832
        %v1000 = vmul.f32 %v322, %v835
        %v1001 = vmul.f32 %v323, %v879
        %v1002 = vmul.f32 %v324, %v882
        %1007 = vrot.lane.b32.xlu0 %v832, 64
        %v1008 = vpop.permute.xlu0 %1007
        %1009 = vrot.lane.b32.xlu0 %v835, 64
        %v1010 = vpop.permute.xlu0 %1009
        %1011 = vrot.lane.b32.xlu0 %v879, 64
        %v1012 = vpop.permute.xlu0 %1011
        %1013 = vrot.lane.b32.xlu0 %v882, 64
        %v1014 = vpop.permute.xlu0 %1013
        %v1019 = vsel %vm331, %v321, %v1008
        %v1020 = vsel %vm331, %v322, %v1010
        %v1021 = vsel %vm331, %v323, %v1012
        %v1022 = vsel %vm331, %v324, %v1014
        %v1023 = vpack.c.bf16 %v1020, %v1019
        %v1024 = vpack.c.bf16 %v1000, %v999
        %v1025 = vpack.c.bf16 %v1022, %v1021
        %v1026 = vpack.c.bf16 %v1002, %v1001
        %v1027 = vld [vmem:[%s2] sm:$0xf]
        %v1028 = vld [vmem:[%s2 + $0x4] sm:$0xf]
        %v1029 = vld [vmem:[%s2 + $0x8] sm:$0xf]
        %v1030 = vld [vmem:[%s2 + $0xc] sm:$0xf]
        %v1031 = vld [vmem:[%s2 + $0x10] sm:$0xf]
        %v1032 = vld [vmem:[%s2 + $0x14] sm:$0xf]
        %v1033 = vld [vmem:[%s2 + $0x18] sm:$0xf]
        %v1034 = vld [vmem:[%s2 + $0x1c] sm:$0xf]
        %v1035 = vld [vmem:[%s2 + $0x20] sm:$0xf]
        %v1036 = vld [vmem:[%s2 + $0x24] sm:$0xf]
        %v1037 = vld [vmem:[%s2 + $0x28] sm:$0xf]
        %v1038 = vld [vmem:[%s2 + $0x2c] sm:$0xf]
        %v1039 = vld [vmem:[%s2 + $0x30] sm:$0xf]
        %v1040 = vld [vmem:[%s2 + $0x34] sm:$0xf]
        %v1041 = vld [vmem:[%s2 + $0x38] sm:$0xf]
        %v1042 = vld [vmem:[%s2 + $0x3c] sm:$0xf]
        %v1043 = vld [vmem:[%s2 + $0x40] sm:$0xf]
        %v1044 = vld [vmem:[%s2 + $0x44] sm:$0xf]
        %v1045 = vld [vmem:[%s2 + $0x48] sm:$0xf]
        %v1046 = vld [vmem:[%s2 + $0x4c] sm:$0xf]
        %v1047 = vld [vmem:[%s2 + $0x50] sm:$0xf]
        %v1048 = vld [vmem:[%s2 + $0x54] sm:$0xf]
        %v1049 = vld [vmem:[%s2 + $0x58] sm:$0xf]
        %v1050 = vld [vmem:[%s2 + $0x5c] sm:$0xf]
        %v1051 = vld [vmem:[%s3] sm:$0x1]
        %v1053 = vlaneseq
        %v1054 = vshrl.u32 %v1053, 7
        %v1055 = vsub.s32 0, %v1054
        %v1056 = vrot.slane %v1051, %v1055
        %v1082 = vunpack.c.l.b16 %v1027
        %v1083 = vunpack.c.l.b16 %v1028
        %v1084 = vunpack.c.l.b16 %v1029
        %v1085 = vunpack.c.l.b16 %v1030
        %v1086 = vunpack.c.l.b16 %v1031
        %v1087 = vunpack.c.l.b16 %v1032
        %v1088 = vunpack.c.l.b16 %v1033
        %v1089 = vunpack.c.l.b16 %v1034
        %v1090 = vunpack.c.l.b16 %v1035
        %v1091 = vunpack.c.l.b16 %v1036
        %v1092 = vunpack.c.l.b16 %v1037
        %v1093 = vunpack.c.l.b16 %v1038
        %v1094 = vunpack.c.l.b16 %v1039
        %v1095 = vunpack.c.l.b16 %v1040
        %v1096 = vunpack.c.l.b16 %v1041
        %v1097 = vunpack.c.l.b16 %v1042
        %v1098 = vunpack.c.l.b16 %v1043
        %v1099 = vunpack.c.l.b16 %v1044
        %v1100 = vunpack.c.l.b16 %v1045
        %v1101 = vunpack.c.l.b16 %v1046
        %v1102 = vunpack.c.l.b16 %v1047
        %v1103 = vunpack.c.l.b16 %v1048
        %v1104 = vunpack.c.l.b16 %v1049
        %v1105 = vunpack.c.l.b16 %v1050
        %v1106 = vpack.c.b16 %v1083, %v1082
        %v1107 = vpack.c.b16 %v1085, %v1084
        %v1108 = vpack.c.b16 %v1087, %v1086
        %v1109 = vpack.c.b16 %v1089, %v1088
        %v1110 = vpack.c.b16 %v1091, %v1090
        %v1111 = vpack.c.b16 %v1093, %v1092
        %v1112 = vpack.c.b16 %v1095, %v1094
        %v1113 = vpack.c.b16 %v1097, %v1096
        %v1114 = vpack.c.b16 %v1099, %v1098
        %v1115 = vpack.c.b16 %v1101, %v1100
        %v1116 = vpack.c.b16 %v1103, %v1102
        %v1117 = vpack.c.b16 %v1105, %v1104
        %v1131 = vsel %vm331, %v1024, 0
        %v1134 = vsel %vm331, %v1026, 0
        %1136 = vmatprep.subr.bf16.mxu0 0
        %1137 = vmatpush1.bf16.msra.mxu0 %v1106
        %1138 = vmatprep.subr.bf16.mxu0 0
        %1139 = vmatpush1.bf16.msra.mxu0 %v1107
        %1140 = vmatprep.subr.bf16.mxu0 0
        %1141 = vmatpush1.bf16.msra.mxu0 %v1108
        %1142 = vmatprep.subr.bf16.mxu0 0
        %1143 = vmatpush1.bf16.msra.mxu0 %v1109
        %1144 = vmatprep.subr.bf16.mxu0 0
        %1145 = vmatpush1.bf16.msra.mxu0 %v1110
        %1146 = vmatprep.subr.bf16.mxu0 0
        %1147 = vmatpush1.bf16.msra.mxu0 %v1111
        %1148 = vmatprep.subr.bf16.mxu0 0
        %1149 = vmatpush1.bf16.msra.mxu0 %v1112
        %1150 = vmatprep.subr.bf16.mxu0 0
        %1151 = vmatpush1.bf16.msra.mxu0 %v1113
        %1152 = vmatprep.subr.bf16.mxu0 0
        %1153 = vmatpush1.bf16.msra.mxu0 %v1114
        %1154 = vmatprep.subr.bf16.mxu0 0
        %1155 = vmatpush1.bf16.msra.mxu0 %v1115
        %1156 = vmatprep.subr.bf16.mxu0 0
        %1157 = vmatpush1.bf16.msra.mxu0 %v1116
        %1158 = vmatprep.subr.bf16.mxu0 0
        %1159 = vmatpush1.bf16.msra.mxu0 %v1117
        %1160 = vmatprep.subr.bf16.mxu0 0
        %1161 = vmatpush1.bf16.msra.mxu0 0
        %1162 = vmatprep.subr.bf16.mxu0 0
        %1163 = vmatpush1.bf16.msra.mxu0 0
        %1164 = vmatprep.subr.bf16.mxu0 0
        %1165 = vmatpush1.bf16.msra.mxu0 0
        %1166 = vmatprep.subr.bf16.mxu0 0
        %1167 = vmatpush1.bf16.msra.mxu0 0
        %1168 = vmatprep.mubr.bf16.mxu0 %v1131
        %1169 = vmatmul.mubr.bf16.gmra.mrb[0].mxu0 %v1023
        %v1170 = vpop.f32.mrb[0].mxu0
        %v1171 = vadd.f32 %v1056, %v1170
        %v1172 = vpop.f32.mrb[0].mxu0
        %v1173 = vpop.f32.mrb[0].mxu0
        %v1174 = vadd.f32 %v1056, %v1173
        %v1175 = vpop.f32.mrb[0].mxu0
        %1176 = vmatprep.mubr.bf16.mxu0 %v1134
        %1177 = vmatmul.mubr.bf16.gmra.mrb[0].mxu0 %v1025
        %v1178 = vpop.f32.mrb[0].mxu0
        %v1179 = vadd.f32 %v1056, %v1178
        %v1180 = vpop.f32.mrb[0].mxu0
        %v1181 = vpop.f32.mrb[0].mxu0
        %v1182 = vadd.f32 %v1056, %v1181
        %v1183 = vpop.f32.mrb[0].mxu0
        %1184 = vdwg.mxu0
        %v1185 = vmax.f32 %v1171, 0.0
        %v1186 = vmax.f32 %v1174, 0.0
        %v1187 = vmax.f32 %v1179, 0.0
        %v1188 = vmax.f32 %v1182, 0.0
        %vm1189 = vcmask 261120
        %1190 = vst.msk [vmem:[%s296] sm:$0xff] %vm1189, %v1185
        %1191 = vst.msk [vmem:[%s296 + $0x8] sm:$0xff] %vm1189, %v1186
        %1192 = vst.msk [vmem:[%s296 + $0x10] sm:$0xff] %vm1189, %v1187
        %1193 = vst.msk [vmem:[%s296 + $0x18] sm:$0xff] %vm1189, %v1188
        %v1194 = vmul.f32 %v325, %v932
        %v1195 = vmul.f32 %v326, %v935
        %v1196 = vmul.f32 %v327, %v940
        %v1197 = vmul.f32 %v328, %v986
        %v1198 = vmul.f32 %v329, %v989
        %v1199 = vmul.f32 %v330, %v994
        %1206 = vrot.lane.b32.xlu0 %v932, 64
        %v1207 = vpop.permute.xlu0 %1206
        %1208 = vrot.lane.b32.xlu0 %v935, 64
        %v1209 = vpop.permute.xlu0 %1208
        %1210 = vrot.lane.b32.xlu0 %v940, 64
        %v1211 = vpop.permute.xlu0 %1210
        %1212 = vrot.lane.b32.xlu0 %v986, 64
        %v1213 = vpop.permute.xlu0 %1212
        %1214 = vrot.lane.b32.xlu0 %v989, 64
        %v1215 = vpop.permute.xlu0 %1214
        %1216 = vrot.lane.b32.xlu0 %v994, 64
        %v1217 = vpop.permute.xlu0 %1216
        %v1224 = vsel %vm331, %v325, %v1207
        %v1225 = vsel %vm331, %v326, %v1209
        %v1226 = vsel %vm331, %v327, %v1211
        %v1227 = vsel %vm331, %v328, %v1213
        %v1228 = vsel %vm331, %v329, %v1215
        %v1229 = vsel %vm331, %v330, %v1217
        %v1230 = vpack.c.bf16 %v1225, %v1224
        %v1231 = vpack.c.bf16 %v1195, %v1194
        %v1232 = vpack.c.bf16 %v1227, %v1226
        %v1233 = vpack.c.bf16 %v1197, %v1196
        %v1234 = vpack.c.bf16 %v1229, %v1228
        %v1235 = vpack.c.bf16 %v1199, %v1198
        %v1236 = vld [vmem:[%s4] sm:$0xf]
        %v1237 = vld [vmem:[%s4 + $0x4] sm:$0xf]
        %v1238 = vld [vmem:[%s4 + $0x8] sm:$0xf]
        %v1239 = vld [vmem:[%s4 + $0xc] sm:$0xf]
        %v1240 = vld [vmem:[%s4 + $0x10] sm:$0xf]
        %v1241 = vld [vmem:[%s4 + $0x14] sm:$0xf]
        %v1242 = vld [vmem:[%s4 + $0x18] sm:$0xf]
        %v1243 = vld [vmem:[%s4 + $0x1c] sm:$0xf]
        %v1244 = vld [vmem:[%s4 + $0x20] sm:$0xf]
        %v1245 = vld [vmem:[%s4 + $0x24] sm:$0xf]
        %v1246 = vld [vmem:[%s4 + $0x28] sm:$0xf]
        %v1247 = vld [vmem:[%s4 + $0x2c] sm:$0xf]
        %v1248 = vld [vmem:[%s4 + $0x30] sm:$0xf]
        %v1249 = vld [vmem:[%s4 + $0x34] sm:$0xf]
        %v1250 = vld [vmem:[%s4 + $0x38] sm:$0xf]
        %v1251 = vld [vmem:[%s4 + $0x3c] sm:$0xf]
        %v1252 = vld [vmem:[%s4 + $0x40] sm:$0xf]
        %v1253 = vld [vmem:[%s4 + $0x44] sm:$0xf]
        %v1254 = vld [vmem:[%s4 + $0x48] sm:$0xf]
        %v1255 = vld [vmem:[%s4 + $0x4c] sm:$0xf]
        %v1256 = vld [vmem:[%s4 + $0x50] sm:$0xf]
        %v1257 = vld [vmem:[%s4 + $0x54] sm:$0xf]
        %v1258 = vld [vmem:[%s4 + $0x58] sm:$0xf]
        %v1259 = vld [vmem:[%s4 + $0x5c] sm:$0xf]
        %v1260 = vld [vmem:[%s5] sm:$0x1]
        %v1262 = vlaneseq
        %v1263 = vshrl.u32 %v1262, 7
        %v1264 = vsub.s32 0, %v1263
        %v1265 = vrot.slane %v1260, %v1264
        %v1291 = vunpack.c.l.b16 %v1236
        %v1292 = vunpack.c.l.b16 %v1237
        %v1293 = vunpack.c.l.b16 %v1238
        %v1294 = vunpack.c.l.b16 %v1239
        %v1295 = vunpack.c.l.b16 %v1240
        %v1296 = vunpack.c.l.b16 %v1241
        %v1297 = vunpack.c.l.b16 %v1242
        %v1298 = vunpack.c.l.b16 %v1243
        %v1299 = vunpack.c.l.b16 %v1244
        %v1300 = vunpack.c.l.b16 %v1245
        %v1301 = vunpack.c.l.b16 %v1246
        %v1302 = vunpack.c.l.b16 %v1247
        %v1303 = vunpack.c.l.b16 %v1248
        %v1304 = vunpack.c.l.b16 %v1249
        %v1305 = vunpack.c.l.b16 %v1250
        %v1306 = vunpack.c.l.b16 %v1251
        %v1307 = vunpack.c.l.b16 %v1252
        %v1308 = vunpack.c.l.b16 %v1253
        %v1309 = vunpack.c.l.b16 %v1254
        %v1310 = vunpack.c.l.b16 %v1255
        %v1311 = vunpack.c.l.b16 %v1256
        %v1312 = vunpack.c.l.b16 %v1257
        %v1313 = vunpack.c.l.b16 %v1258
        %v1314 = vunpack.c.l.b16 %v1259
        %v1315 = vpack.c.b16 %v1292, %v1291
        %v1316 = vpack.c.b16 %v1294, %v1293
        %v1317 = vpack.c.b16 %v1296, %v1295
        %v1318 = vpack.c.b16 %v1298, %v1297
        %v1319 = vpack.c.b16 %v1300, %v1299
        %v1320 = vpack.c.b16 %v1302, %v1301
        %v1321 = vpack.c.b16 %v1304, %v1303
        %v1322 = vpack.c.b16 %v1306, %v1305
        %v1323 = vpack.c.b16 %v1308, %v1307
        %v1324 = vpack.c.b16 %v1310, %v1309
        %v1325 = vpack.c.b16 %v1312, %v1311
        %v1326 = vpack.c.b16 %v1314, %v1313
        %v1340 = vsel %vm331, %v1231, 0
        %v1343 = vsel %vm331, %v1233, 0
        %v1346 = vsel %vm331, %v1235, 0
        %1348 = vmatprep.subr.bf16.mxu0 0
        %1349 = vmatpush1.bf16.msra.mxu0 %v1315
        %1350 = vmatprep.subr.bf16.mxu0 0
        %1351 = vmatpush1.bf16.msra.mxu0 %v1316
        %1352 = vmatprep.subr.bf16.mxu0 0
        %1353 = vmatpush1.bf16.msra.mxu0 %v1317
        %1354 = vmatprep.subr.bf16.mxu0 0
        %1355 = vmatpush1.bf16.msra.mxu0 %v1318
        %1356 = vmatprep.subr.bf16.mxu0 0
        %1357 = vmatpush1.bf16.msra.mxu0 %v1319
        %1358 = vmatprep.subr.bf16.mxu0 0
        %1359 = vmatpush1.bf16.msra.mxu0 %v1320
        %1360 = vmatprep.subr.bf16.mxu0 0
        %1361 = vmatpush1.bf16.msra.mxu0 %v1321
        %1362 = vmatprep.subr.bf16.mxu0 0
        %1363 = vmatpush1.bf16.msra.mxu0 %v1322
        %1364 = vmatprep.subr.bf16.mxu0 0
        %1365 = vmatpush1.bf16.msra.mxu0 %v1323
        %1366 = vmatprep.subr.bf16.mxu0 0
        %1367 = vmatpush1.bf16.msra.mxu0 %v1324
        %1368 = vmatprep.subr.bf16.mxu0 0
        %1369 = vmatpush1.bf16.msra.mxu0 %v1325
        %1370 = vmatprep.subr.bf16.mxu0 0
        %1371 = vmatpush1.bf16.msra.mxu0 %v1326
        %1372 = vmatprep.subr.bf16.mxu0 0
        %1373 = vmatpush1.bf16.msra.mxu0 0
        %1374 = vmatprep.subr.bf16.mxu0 0
        %1375 = vmatpush1.bf16.msra.mxu0 0
        %1376 = vmatprep.subr.bf16.mxu0 0
        %1377 = vmatpush1.bf16.msra.mxu0 0
        %1378 = vmatprep.subr.bf16.mxu0 0
        %1379 = vmatpush1.bf16.msra.mxu0 0
        %1380 = vmatprep.mubr.bf16.mxu0 %v1340
        %1381 = vmatmul.mubr.bf16.gmra.mrb[0].mxu0 %v1230
        %v1382 = vpop.f32.mrb[0].mxu0
        %v1383 = vadd.f32 %v1265, %v1382
        %v1384 = vpop.f32.mrb[0].mxu0
        %v1385 = vpop.f32.mrb[0].mxu0
        %v1386 = vadd.f32 %v1265, %v1385
        %v1387 = vpop.f32.mrb[0].mxu0
        %1388 = vmatprep.mubr.bf16.mxu0 %v1343
        %1389 = vmatmul.mubr.bf16.gmra.mrb[0].mxu0 %v1232
        %v1390 = vpop.f32.mrb[0].mxu0
        %v1391 = vadd.f32 %v1265, %v1390
        %v1392 = vpop.f32.mrb[0].mxu0
        %v1393 = vpop.f32.mrb[0].mxu0
        %v1394 = vadd.f32 %v1265, %v1393
        %v1395 = vpop.f32.mrb[0].mxu0
        %1396 = vmatprep.mubr.bf16.mxu0 %v1346
        %1397 = vmatmul.mubr.bf16.gmra.mrb[0].mxu0 %v1234
        %v1398 = vpop.f32.mrb[0].mxu0
        %v1399 = vadd.f32 %v1265, %v1398
        %v1400 = vpop.f32.mrb[0].mxu0
        %v1401 = vpop.f32.mrb[0].mxu0
        %v1402 = vadd.f32 %v1265, %v1401
        %v1403 = vpop.f32.mrb[0].mxu0
        %1404 = vdwg.mxu0
        %v1405 = vmax.f32 %v1383, 0.0
        %v1406 = vmax.f32 %v1386, 0.0
        %v1407 = vmax.f32 %v1391, 0.0
        %v1408 = vmax.f32 %v1394, 0.0
        %v1409 = vmax.f32 %v1399, 0.0
        %v1410 = vmax.f32 %v1402, 0.0
        %1411 = vst.msk [vmem:[%s303] sm:$0xff] %vm1189, %v1405
        %1412 = vst.msk [vmem:[%s303 + $0x8] sm:$0xff] %vm1189, %v1406
        %1413 = vst.msk [vmem:[%s303 + $0x10] sm:$0xff] %vm1189, %v1407
        %1414 = vst.msk [vmem:[%s303 + $0x18] sm:$0xff] %vm1189, %v1408
        %1415 = vst.msk [vmem:[%s303 + $0x20] sm:$0xff] %vm1189, %v1409
        %1416 = vst.msk [vmem:[%s303 + $0x28] sm:$0xff] %vm1189, %v1410
        %s1417 = sand.u32 %s169, 1
        %s1418 = scalar_lea.sflag [#allocation3], %s1417
        %s1419 = sand.u32 %s169, 1
        %s1420 = smul.addr %s1419, 32
        %s1421 = scalar_lea.vmem [#allocation2], %s1420
        %s1422 = sand.u32 %s195, 1
        %s1423 = scalar_lea.sflag [#allocation5], %s1422
        %s1424 = sand.u32 %s195, 1
        %s1425 = smul.addr %s1424, 48
        %s1426 = scalar_lea.vmem [#allocation4], %s1425
        // Predicated region
        $region45: #{tpu_custom_call.1} parent=43 // pred_check
          %p1427 = pneg %p179
        $region46: #{tpu_custom_call.1} parent=43 // pred_check_branch
          %1429 = sbr.rel (%p1427) target = $region48
        $region47: #{tpu_custom_call.1} parent=43 // pred_region
          %s1430 = smul.u32 2, %s25
          %s1432 = ssub.s32 512, 512
          %1433 = vsyncadd %s1418, %s1432
          %s1434 = smul.addr %s1430, 2
          %s1435 = smul.addr %s1434, 128
          %s1436 = scalar_lea.hbm %s6, %s1435
          %s1437 = sshll.u32 %s1421, 4
          %s1438 = int_to_ptr.vmem [resolvable:$true] %s1437
          %1443 = dma.vmem_to_hbm [thread:$0]  %s1438, 512, %s1436, %s1418, 128, 128, 8
        $region48: #{tpu_custom_call.1} parent=43 // pred_fallthru
          _
        // Predicated region
        $region49: #{tpu_custom_call.1} parent=43 // pred_check
          %p1444 = pneg %p205
        $region50: #{tpu_custom_call.1} parent=43 // pred_check_branch
          %1446 = sbr.rel (%p1444) target = $region52
        $region51: #{tpu_custom_call.1} parent=43 // pred_region
          %s1447 = smul.u32 2, %s25
          %s1449 = ssub.s32 768, 768
          %1450 = vsyncadd %s1423, %s1449
          %s1451 = smul.addr %s1447, 3
          %s1452 = smul.addr %s1451, 128
          %s1453 = scalar_lea.hbm %s7, %s1452
          %s1454 = sshll.u32 %s1426, 4
          %s1455 = int_to_ptr.vmem [resolvable:$true] %s1454
          %1460 = dma.vmem_to_hbm [thread:$0]  %s1455, 768, %s1453, %s1423, 128, 128, 8
        $region52: #{tpu_custom_call.1} parent=43 // pred_fallthru
          _
      $region44: #{tpu_custom_call.1} parent=5 // pred_fallthru
        _
      %p1461 = scmp.le.s32.totalorder 2, %s20
      // Predicated region
      $region53: #{tpu_custom_call.1} parent=5 // pred_check
        %p1462 = pneg %p1461
      $region54: #{tpu_custom_call.1} parent=5 // pred_check_branch
        %1464 = sbr.rel (%p1462) target = $region56
      $region55: #{tpu_custom_call.1} parent=5 // pred_region
        %s1465 = ssub.s32 %s20, 2
        // Predicated region
        $region57: #{tpu_custom_call.1} parent=55 // pred_check
          %p1466 = pneg %p185
        $region58: #{tpu_custom_call.1} parent=55 // pred_check_branch
          %1468 = sbr.rel (%p1466) target = $region60
        $region59: #{tpu_custom_call.1} parent=55 // pred_region
          %s1469 = sand.u32 %s170, 1
          %s1470 = scalar_lea.sflag [#allocation3], %s1469
          %s1471 = sand.u32 %s170, 1
          %s1472 = smul.addr %s1471, 32
          %s1473 = scalar_lea.vmem [#allocation2], %s1472
          %1474 = dma.done %s1470, 512
        $region60: #{tpu_custom_call.1} parent=55 // pred_fallthru
          _
        // Predicated region
        $region61: #{tpu_custom_call.1} parent=55 // pred_check
          %p1475 = pneg %p211
        $region62: #{tpu_custom_call.1} parent=55 // pred_check_branch
          %1477 = sbr.rel (%p1475) target = $region64
        $region63: #{tpu_custom_call.1} parent=55 // pred_region
          %s1478 = sand.u32 %s196, 1
          %s1479 = scalar_lea.sflag [#allocation5], %s1478
          %s1480 = sand.u32 %s196, 1
          %s1481 = smul.addr %s1480, 48
          %s1482 = scalar_lea.vmem [#allocation4], %s1481
          %1483 = dma.done %s1479, 768
        $region64: #{tpu_custom_call.1} parent=55 // pred_fallthru
          _
      $region56: #{tpu_custom_call.1} parent=5 // pred_fallthru
        _
    $region6: #{tpu_custom_call.1} parent=1 // loop_footer
      %s24 = sadd.s32 1, %s20
    $region7: #{tpu_custom_call.1} parent=1 // loop_footer_branch
      %19 = sbr.rel target = $region3
    $region8: #{tpu_custom_call.1} parent=1 // loop_exit
      _
    %1484 = vsyncpa [#allocation3], 1
    %s1485 = scalar_lea.sflag [#allocation3], 1
    %1486 = vsyncpa %s1485, 1
    %1487 = vsyncpa [#allocation5], 1
    %s1488 = scalar_lea.sflag [#allocation5], 1
    %1489 = vsyncpa %s1488, 1

</llo_original>
